<compile_context>
chip_gen: v5e
topology: v5e:2x2
jax: 0.10.0
libtpu: 0.0.40
codegen_flags: <defaults>
</compile_context>

<pallas_src>
import jax
import jax.numpy as jnp
from jax.experimental import pallas as pl
from jax.experimental.pallas import tpu as pltpu

# ----------------------------- small configuration -----------------------------
B = 2               # batch
S = 8               # sequence length
HIDDEN = 32         # BERT hidden size (small stand-in for 768)
NUM_HEADS = 2
HEAD_DIM = HIDDEN // NUM_HEADS
INTER = 64          # BERT intermediate size
VOCAB = 100
MAX_POS = 64
TYPE_VOCAB = 2

CHAR_VOCAB = 40
CHAR_EMB = 30       # char_embedding_dim
CHAR_FILTERS = 50   # num_filters
CHAR_KERNEL = 3
MAX_WORD_LEN = 20

NUMERIC_IN = 5      # nn.Linear(5, 50)
NUMERIC_OUT = 50
CAT_VOCABS = {"a": 7, "b": 9}
CAT_EMB = 50
NUM_LABELS = 6
CAT_TOTAL = len(CAT_VOCABS) * CAT_EMB                                    # 100
COMBINED = HIDDEN + CHAR_FILTERS + NUMERIC_OUT + CAT_TOTAL               # 232
LN_EPS = 1e-12

# lane/sublane-friendly padded sizes (padding applied to weights ONCE at init)
KC = CHAR_KERNEL * CHAR_EMB     # 90  im2col contraction dim
KC_PAD = 128
CHAR_F_PAD = 64                 # 50  -> 64
NUM_IN_PAD = 16                 # 5   -> 16 (keeps every slab row offset 16-aligned for bf16)
NUM_OUT_PAD = 64                # 50  -> 64
CAT_PAD = 128                   # 100 -> 128
LBL_PAD = 128                   # 6   -> 128 (lane-dense classifier store)

# ---- packed weight-slab row offsets (all multiples of 16 -> bf16-tile aligned) ----
_R_QKV = 0                          # (HIDDEN, 96->128)  Wq|Wk|Wv
_R_WO = _R_QKV + HIDDEN             # 32  (HIDDEN, HIDDEN)
_R_WI = _R_WO + HIDDEN              # 64  (HIDDEN, INTER)
_R_WD = _R_WI + HIDDEN              # 96  (INTER, HIDDEN)
_R_CONV = _R_WD + INTER             # 160 (KC_PAD, CHAR_F_PAD)
_R_NUM = _R_CONV + KC_PAD           # 288 (NUM_IN_PAD, NUM_OUT_PAD)
_R_CSEQ = _R_NUM + NUM_IN_PAD       # 304 (HIDDEN, LBL_PAD)
_R_CCHAR = _R_CSEQ + HIDDEN         # 336 (CHAR_F_PAD, LBL_PAD)
_R_CNUM = _R_CCHAR + CHAR_F_PAD     # 400 (NUM_OUT_PAD, LBL_PAD)
_R_CCAT = _R_CNUM + NUM_OUT_PAD     # 464 (CAT_PAD, LBL_PAD)
W_ROWS = _R_CCAT + CAT_PAD          # 592

# ---- bias / LayerNorm-vector slab rows (one (1, <=128) vector per row) ----
_V_EMB_G, _V_EMB_B = 0, 1
_V_BQKV = 2
_V_BO = 3
_V_LN1_G, _V_LN1_B = 4, 5
_V_BI = 6
_V_BD = 7
_V_LN2_G, _V_LN2_B = 8, 9
_V_CONV_B = 10
_V_NUM_B = 11
_V_CLS_B = 12
VEC_ROWS = 16


def _layernorm(x, gamma, beta):
    mu = jnp.mean(x, axis=-1, keepdims=True)
    var = jnp.mean((x - mu) ** 2, axis=-1, keepdims=True)
    return (x - mu) * jax.lax.rsqrt(var + LN_EPS) * gamma + beta


# ------------------------------- fused Pallas kernel --------------------------------
def _fused_kernel(emb_ref, bias_ref, ximc_ref, numf_ref, cat_ref,
                  vec_ref, w_ref, o_ref):
    n_tok = emb_ref.shape[0]                  # B * S
    bsz, seq, _ = o_ref.shape
    w_len = ximc_ref.shape[0] // n_tok        # MAX_WORD_LEN
    f32 = jnp.float32
    bf16 = jnp.bfloat16

    def mm(a, b):                              # bf16 MXU matmul, f32 accumulate
        return jnp.dot(a.astype(bf16), b.astype(bf16), preferred_element_type=f32)

    def mm_t(a, b):                            # a @ b.T without materializing the transpose
        return jax.lax.dot_general(a.astype(bf16), b.astype(bf16),
                                   (((1,), (1,)), ((), ())),
                                   preferred_element_type=f32)

    vecs = vec_ref[...]                        # (16, 128) f32: all biases / LN vectors

    # ---- BERT embedding LayerNorm (gather-sum done in wrapper) ----
    x = _layernorm(emb_ref[...], vecs[_V_EMB_G:_V_EMB_G + 1, :HIDDEN],
                   vecs[_V_EMB_B:_V_EMB_B + 1, :HIDDEN])                  # (N, H) f32

    # ---- self-attention: ONE fused QKV matmul, static per-head lane slices ----
    qkv = mm(x, w_ref[_R_QKV:_R_QKV + HIDDEN, :]) + vecs[_V_BQKV:_V_BQKV + 1, :]   # (N, 128)
    bias = bias_ref[...]                                                  # (N, N) block-diag mask
    scale = 1.0 / (HEAD_DIM ** 0.5)
    ctx_heads = []
    for h in range(NUM_HEADS):                 # fully unrolled (NUM_HEADS = 2)
        qh = qkv[:, h * HEAD_DIM:(h + 1) * HEAD_DIM]
        kh = qkv[:, HIDDEN + h * HEAD_DIM:HIDDEN + (h + 1) * HEAD_DIM]
        vh = qkv[:, 2 * HIDDEN + h * HEAD_DIM:2 * HIDDEN + (h + 1) * HEAD_DIM]
        scores = mm_t(qh, kh) * scale + bias                              # (N, N)
        m = jnp.max(scores, axis=-1, keepdims=True)
        e = jnp.exp(scores - m)                                           # attn dropout: identity
        probs = e * pl.reciprocal(jnp.sum(e, axis=-1, keepdims=True), approx=True)
        ctx_heads.append(mm(probs, vh))                                   # (N, D)
    ctx = jnp.concatenate(ctx_heads, axis=-1)                             # (N, H)
    attn_out = mm(ctx, w_ref[_R_WO:_R_WO + HIDDEN, :HIDDEN]) + vecs[_V_BO:_V_BO + 1, :HIDDEN]

    h1 = _layernorm(attn_out + x, vecs[_V_LN1_G:_V_LN1_G + 1, :HIDDEN],
                    vecs[_V_LN1_B:_V_LN1_B + 1, :HIDDEN])
    # TODO(synk): HF BERT 'gelu' is erf-based; using tanh approximation for robust Mosaic lowering.
    inter = jax.nn.gelu(mm(h1, w_ref[_R_WI:_R_WI + HIDDEN, :INTER])
                        + vecs[_V_BI:_V_BI + 1, :INTER], approximate=True)
    seq_out = _layernorm(mm(inter, w_ref[_R_WD:_R_WD + INTER, :HIDDEN])
                         + vecs[_V_BD:_V_BD + 1, :HIDDEN] + h1,
                         vecs[_V_LN2_G:_V_LN2_G + 1, :HIDDEN],
                         vecs[_V_LN2_B:_V_LN2_B + 1, :HIDDEN])            # (N, H)

    # ---- CharacterCNN: one im2col matmul + ReLU + leading-axis max-pool (pure VPU) ----
    conv = jnp.maximum(mm(ximc_ref[...], w_ref[_R_CONV:_R_CONV + KC_PAD, :CHAR_F_PAD])
                       + vecs[_V_CONV_B:_V_CONV_B + 1, :CHAR_F_PAD], 0.0)  # (W*N, F_PAD)
    char_pooled = jnp.max(conv.reshape(w_len, n_tok, CHAR_F_PAD), axis=0)  # (N, F_PAD)

    # ---- numeric embedding Linear(5, 50) (zero-padded 16 -> 64) ----
    num_out = (mm(numf_ref[...], w_ref[_R_NUM:_R_NUM + NUM_IN_PAD, :NUM_OUT_PAD])
               + vecs[_V_NUM_B:_V_NUM_B + 1, :NUM_OUT_PAD])               # (B, 64)

    # ---- classifier: concat decomposed into per-segment matmuls, lane-dense output ----
    tok_logits = (mm(seq_out, w_ref[_R_CSEQ:_R_CSEQ + HIDDEN, :])
                  + mm(char_pooled, w_ref[_R_CCHAR:_R_CCHAR + CHAR_F_PAD, :])
                  + vecs[_V_CLS_B:_V_CLS_B + 1, :])                       # (N, 128)
    bat_logits = (mm(num_out, w_ref[_R_CNUM:_R_CNUM + NUM_OUT_PAD, :])
                  + mm(cat_ref[...], w_ref[_R_CCAT:_R_CCAT + CAT_PAD, :]))  # (B, 128)

    # final dropout(0.1): identity in eval mode
    o_ref[...] = tok_logits.reshape(bsz, seq, LBL_PAD) + bat_logits[:, None, :]


def fused_forward_pallas(emb, attn_bias, ximc2d, numf, cat_vec, kparams, bsz, seq):
    args = [emb, attn_bias, ximc2d, numf, cat_vec,
            kparams['vec_slab'], kparams['w_slab']]

    def full_spec(a):
        nd = a.ndim
        return pl.BlockSpec(a.shape, lambda i, _nd=nd: (0,) * _nd)

    return pl.pallas_call(
        _fused_kernel,
        out_shape=jax.ShapeDtypeStruct((bsz, seq, LBL_PAD), jnp.float32),
        grid=(1,),
        in_specs=[full_spec(a) for a in args],
        out_specs=pl.BlockSpec((bsz, seq, LBL_PAD), lambda i: (0, 0, 0)),
        compiler_params=pltpu.CompilerParams(dimension_semantics=("arbitrary",)),
    )(*args)


# ------------------------------ parameters (synthetic) ------------------------------
def init_params(key):
    keys = iter(jax.random.split(key, 40))

    def nrm(shape):
        return (0.02 * jax.random.normal(next(keys), shape)).astype(jnp.float32)

    p = {
        # BERT embeddings
        'word_emb': nrm((VOCAB, HIDDEN)),
        'pos_emb': nrm((MAX_POS, HIDDEN)),
        'type_emb': nrm((TYPE_VOCAB, HIDDEN)),
        'emb_ln_g': jnp.ones((1, HIDDEN), jnp.float32),
        'emb_ln_b': jnp.zeros((1, HIDDEN), jnp.float32),
        # one transformer layer
        'wq': nrm((HIDDEN, HIDDEN)), 'bq': jnp.zeros((1, HIDDEN), jnp.float32),
        'wk': nrm((HIDDEN, HIDDEN)), 'bk': jnp.zeros((1, HIDDEN), jnp.float32),
        'wv': nrm((HIDDEN, HIDDEN)), 'bv': jnp.zeros((1, HIDDEN), jnp.float32),
        'wo': nrm((HIDDEN, HIDDEN)), 'bo': jnp.zeros((1, HIDDEN), jnp.float32),
        'ln1_g': jnp.ones((1, HIDDEN), jnp.float32), 'ln1_b': jnp.zeros((1, HIDDEN), jnp.float32),
        'wi': nrm((HIDDEN, INTER)), 'bi': jnp.zeros((1, INTER), jnp.float32),
        'wd': nrm((INTER, HIDDEN)), 'bd': jnp.zeros((1, HIDDEN), jnp.float32),
        'ln2_g': jnp.ones((1, HIDDEN), jnp.float32), 'ln2_b': jnp.zeros((1, HIDDEN), jnp.float32),
        # CharacterCNN — conv weight stored in PyTorch Conv1d layout (F, Cin, K)
        'char_emb': nrm((CHAR_VOCAB, CHAR_EMB)).at[0].set(0.0),        # padding_idx=0
        'conv_w': nrm((CHAR_FILTERS, CHAR_EMB, CHAR_KERNEL)),
        'conv_b': nrm((1, CHAR_FILTERS)),
        # numeric embedding Linear(5, 50)
        'num_w': nrm((NUMERIC_IN, NUMERIC_OUT)), 'num_b': nrm((1, NUMERIC_OUT)),
        # classifier
        'cls_w': nrm((COMBINED, NUM_LABELS)), 'cls_b': nrm((1, NUM_LABELS)),
    }
    for name, vocab in CAT_VOCABS.items():
        p['cat_' + name] = nrm((vocab, CAT_EMB))
    return p


def prepare_kernel_params(p):
    """One-time repack of module parameters into TWO kernel slabs:
       * vec_slab (VEC_ROWS, 128) f32 — every (1, ·) bias / LayerNorm vector, one per row.
       * w_slab   (W_ROWS, 128) bf16 — all matmul weights (QKV fused, conv im2col'd,
         classifier split per concat segment), zero-padded lane-dense.
    Done at init, NOT per call."""
    def pad_to(a, shape):
        return jnp.pad(a, [(0, t - s) for s, t in zip(a.shape, shape)])

    # ---- bias / LN vector slab (f32) ----
    vec = jnp.zeros((VEC_ROWS, 128), jnp.float32)

    def put(slab, row, v):
        v = jnp.asarray(v, jnp.float32).reshape(-1)
        return slab.at[row, :v.shape[0]].set(v)

    vec = put(vec, _V_EMB_G, p['emb_ln_g'])
    vec = put(vec, _V_EMB_B, p['emb_ln_b'])
    vec = put(vec, _V_BQKV, jnp.concatenate([p['bq'], p['bk'], p['bv']], axis=-1))
    vec = put(vec, _V_BO, p['bo'])
    vec = put(vec, _V_LN1_G, p['ln1_g'])
    vec = put(vec, _V_LN1_B, p['ln1_b'])
    vec = put(vec, _V_BI, p['bi'])
    vec = put(vec, _V_BD, p['bd'])
    vec = put(vec, _V_LN2_G, p['ln2_g'])
    vec = put(vec, _V_LN2_B, p['ln2_b'])
    vec = put(vec, _V_CONV_B, p['conv_b'])
    vec = put(vec, _V_NUM_B, p['num_b'])
    vec = put(vec, _V_CLS_B, p['cls_b'])

    # ---- weight slab (bf16) ----
    wqkv = jnp.concatenate([p['wq'], p['wk'], p['wv']], axis=1)          # (H, 96)
    # PyTorch Conv1d weight (F, Cin, K) -> im2col rows ordered (k, c) -> (K*Cin, F)
    conv_w = jnp.transpose(p['conv_w'], (2, 1, 0)).reshape(KC, CHAR_FILTERS)
    cls_w = p['cls_w']
    o0 = HIDDEN
    o1 = o0 + CHAR_FILTERS
    o2 = o1 + NUMERIC_OUT
    o3 = o2 + CAT_TOTAL

    rows = [
        pad_to(wqkv, (HIDDEN, 128)),                 # _R_QKV
        pad_to(p['wo'], (HIDDEN, 128)),              # _R_WO
        pad_to(p['wi'], (HIDDEN, 128)),              # _R_WI
        pad_to(p['wd'], (INTER, 128)),               # _R_WD
        pad_to(conv_w, (KC_PAD, 128)),               # _R_CONV
        pad_to(p['num_w'], (NUM_IN_PAD, 128)),       # _R_NUM
        pad_to(cls_w[:o0], (HIDDEN, 128)),           # _R_CSEQ
        pad_to(cls_w[o0:o1], (CHAR_F_PAD, 128)),     # _R_CCHAR
        pad_to(cls_w[o1:o2], (NUM_OUT_PAD, 128)),    # _R_CNUM
        pad_to(cls_w[o2:o3], (CAT_PAD, 128)),        # _R_CCAT
    ]
    w_slab = jnp.concatenate(rows, axis=0).astype(jnp.bfloat16)
    assert w_slab.shape == (W_ROWS, 128)

    return {'vec_slab': vec, 'w_slab': w_slab}


# --------------------------------- forward pass ---------------------------------
def forward(params, kparams, input_ids, attention_mask, char_ids,
            numeric_features, categorical_features):
    bsz, seq = input_ids.shape
    n_tok = bsz * seq

    # --- BERT embedding gathers (plain JAX); LayerNorm happens inside the kernel ---
    we = params['word_emb'][input_ids]                      # (B, S, H)
    pe = params['pos_emb'][:seq][None, :, :]
    te = params['type_emb'][0][None, None, :]
    emb = (we + pe + te).reshape(n_tok, HIDDEN)

    # --- block-diagonal additive attention bias, hoisted out of the kernel ---
    tok_batch = jnp.repeat(jnp.arange(bsz), seq)            # which batch each token belongs to
    key_ok = attention_mask.reshape(n_tok) > 0
    allowed = (tok_batch[:, None] == tok_batch[None, :]) & key_ok[None, :]
    attn_bias = jnp.where(allowed, 0.0, -10000.0).astype(jnp.float32)     # (N, N)

    # --- CharacterCNN im2col: word-position-major, built from shifted slices (no gather) ---
    flat_chars = char_ids.reshape(n_tok, MAX_WORD_LEN)
    ce = params['char_emb'][flat_chars]                     # (N, W, C)
    cet = jnp.transpose(ce, (1, 0, 2))                      # (W, N, C) position-major
    pad = (CHAR_KERNEL - 1) // 2
    cep = jnp.pad(cet, ((pad, pad), (0, 0), (0, 0)))        # conv 'same' zero padding
    ximc = jnp.concatenate([cep[k:k + MAX_WORD_LEN] for k in range(CHAR_KERNEL)],
                           axis=-1)                         # (W, N, K*C)
    ximc = jnp.pad(ximc, ((0, 0), (0, 0), (0, KC_PAD - KC)))
    ximc2d = ximc.reshape(MAX_WORD_LEN * n_tok, KC_PAD).astype(jnp.bfloat16)  # (W*N, 128)

    # --- numeric features, zero-padded contraction dim (5 -> 16) ---
    numf = jnp.pad(numeric_features.astype(jnp.float32),
                   ((0, 0), (0, NUM_IN_PAD - NUMERIC_IN)))

    # --- categorical gathers (insertion order, like nn.ModuleDict) ---
    cat_vec = jnp.concatenate(
        [params['cat_' + name][categorical_features[name]] for name in CAT_VOCABS],
        axis=-1)                                            # (B, 100)
    cat_vec = jnp.pad(cat_vec, ((0, 0), (0, CAT_PAD - CAT_TOTAL)))

    logits_pad = fused_forward_pallas(emb, attn_bias, ximc2d, numf, cat_vec,
                                      kparams, bsz, seq)    # (B, S, 128) lane-dense
    return logits_pad[:, :, :NUM_LABELS]


if __name__ == "__main__":
    key = jax.random.PRNGKey(0)
    pkey, dkey = jax.random.split(key)
    params = init_params(pkey)
    kparams = prepare_kernel_params(params)

    k1, k2, k3, k4, k5 = jax.random.split(dkey, 5)
    input_ids = jax.random.randint(k1, (B, S), 1, VOCAB)
    attention_mask = jnp.ones((B, S), jnp.int32).at[:, -2:].set(0)   # some padding
    char_ids = jax.random.randint(k2, (B, S, MAX_WORD_LEN), 0, CHAR_VOCAB)
    numeric_features = jax.random.normal(k3, (B, NUMERIC_IN), jnp.float32)
    categorical_features = {
        "a": jax.random.randint(k4, (B,), 0, CAT_VOCABS["a"]),
        "b": jax.random.randint(k5, (B,), 0, CAT_VOCABS["b"]),
    }

    fwd = jax.jit(forward)
    logits = fwd(params, kparams, input_ids, attention_mask, char_ids,
                 numeric_features, categorical_features)
    jax.block_until_ready(logits)
    assert logits.shape == (B, S, NUM_LABELS) and logits.dtype == jnp.float32
    print("KERNEL_OK")
</pallas_src>

<mosaic_0001>
module attributes {stable_mosaic.version = 11 : i64} {
  func.func @_fused_kernel(%arg0: i32, %arg1: memref<16x32xf32, #tpu.memory_space<vmem>>, %arg2: memref<16x16xf32, #tpu.memory_space<vmem>>, %arg3: memref<320x128xbf16, #tpu.memory_space<vmem>>, %arg4: memref<2x16xf32, #tpu.memory_space<vmem>>, %arg5: memref<2x128xf32, #tpu.memory_space<vmem>>, %arg6: memref<16x128xf32, #tpu.memory_space<vmem>>, %arg7: memref<592x128xbf16, #tpu.memory_space<vmem>>, %arg8: memref<2x8x128xf32, #tpu.memory_space<vmem>>) attributes {dimension_semantics = [#tpu.dimension_semantics<arbitrary>], iteration_bounds = array<i64: 1>, scalar_prefetch = 0 : i64, scratch_operands = 0 : i64, tpu.core_type = #tpu.core_type<tc>, window_params = [{pipeline_mode = #tpu.pipeline_mode<synchronous>, transform_indices = @transform_0, window_bounds = array<i64: 16, 32>}, {pipeline_mode = #tpu.pipeline_mode<synchronous>, transform_indices = @transform_1, window_bounds = array<i64: 16, 16>}, {pipeline_mode = #tpu.pipeline_mode<synchronous>, transform_indices = @transform_2, window_bounds = array<i64: 320, 128>}, {pipeline_mode = #tpu.pipeline_mode<synchronous>, transform_indices = @transform_3, window_bounds = array<i64: 2, 16>}, {pipeline_mode = #tpu.pipeline_mode<synchronous>, transform_indices = @transform_4, window_bounds = array<i64: 2, 128>}, {pipeline_mode = #tpu.pipeline_mode<synchronous>, transform_indices = @transform_5, window_bounds = array<i64: 16, 128>}, {pipeline_mode = #tpu.pipeline_mode<synchronous>, transform_indices = @transform_6, window_bounds = array<i64: 592, 128>}, {pipeline_mode = #tpu.pipeline_mode<synchronous>, transform_indices = @transform_7, window_bounds = array<i64: 2, 8, 128>}]} {
    %c0 = arith.constant 0 : index
    %c0_0 = arith.constant 0 : index
    %0 = vector.load %arg6[%c0, %c0_0] : memref<16x128xf32, #tpu.memory_space<vmem>>, vector<16x128xf32>
    %c0_1 = arith.constant 0 : index
    %c0_2 = arith.constant 0 : index
    %1 = vector.load %arg1[%c0_1, %c0_2] : memref<16x32xf32, #tpu.memory_space<vmem>>, vector<16x32xf32>
    %2 = vector.extract_strided_slice %0 {offsets = [0, 0], sizes = [1, 32], strides = [1, 1]} : vector<16x128xf32> to vector<1x32xf32>
    %3 = vector.extract_strided_slice %0 {offsets = [1, 0], sizes = [1, 32], strides = [1, 1]} : vector<16x128xf32> to vector<1x32xf32>
    %cst = arith.constant dense<0.000000e+00> : vector<16xf32>
    %4 = vector.multi_reduction <add>, %1, %cst [1] : vector<16x32xf32> to vector<16xf32>
    %5 = vector.shape_cast %4 : vector<16xf32> to vector<16x1xf32>
    %cst_3 = arith.constant 3.200000e+01 : f32
    %6 = vector.broadcast %cst_3 : f32 to vector<16x1xf32>
    %7 = arith.divf %5, %6 : vector<16x1xf32>
    %8 = vector.broadcast %7 : vector<16x1xf32> to vector<16x32xf32>
    %9 = arith.subf %1, %8 : vector<16x32xf32>
    %10 = arith.mulf %9, %9 : vector<16x32xf32>
    %cst_4 = arith.constant dense<0.000000e+00> : vector<16xf32>
    %11 = vector.multi_reduction <add>, %10, %cst_4 [1] : vector<16x32xf32> to vector<16xf32>
    %12 = vector.shape_cast %11 : vector<16xf32> to vector<16x1xf32>
    %cst_5 = arith.constant 3.200000e+01 : f32
    %13 = vector.broadcast %cst_5 : f32 to vector<16x1xf32>
    %14 = arith.divf %12, %13 : vector<16x1xf32>
    %15 = vector.broadcast %7 : vector<16x1xf32> to vector<16x32xf32>
    %16 = arith.subf %1, %15 : vector<16x32xf32>
    %cst_6 = arith.constant 9.99999996E-13 : f32
    %17 = vector.broadcast %cst_6 : f32 to vector<16x1xf32>
    %18 = arith.addf %14, %17 : vector<16x1xf32>
    %19 = math.rsqrt %18 : vector<16x1xf32>
    %20 = vector.broadcast %19 : vector<16x1xf32> to vector<16x32xf32>
    %21 = arith.mulf %16, %20 : vector<16x32xf32>
    %22 = vector.broadcast %2 : vector<1x32xf32> to vector<16x32xf32>
    %23 = arith.mulf %21, %22 : vector<16x32xf32>
    %24 = vector.broadcast %3 : vector<1x32xf32> to vector<16x32xf32>
    %25 = arith.addf %23, %24 : vector<16x32xf32>
    %c0_7 = arith.constant 0 : index
    %c0_8 = arith.constant 0 : index
    %26 = vector.load %arg7[%c0_7, %c0_8] : memref<592x128xbf16, #tpu.memory_space<vmem>>, vector<32x128xbf16>
    %27 = arith.truncf %25 : vector<16x32xf32> to vector<16x32xbf16>
    %cst_9 = arith.constant dense<0.000000e+00> : vector<16x128xf32>
    %28 = tpu.matmul %27, %26, %cst_9 {dimension_numbers = #tpu.dot_dimension_numbers<[1], [0], [0], [1], [0, 0, 1, 1], [], []>} : vector<16x32xbf16>, vector<32x128xbf16>, vector<16x128xf32> -> vector<16x128xf32>
    %29 = vector.extract_strided_slice %0 {offsets = [2, 0], sizes = [1, 128], strides = [1, 1]} : vector<16x128xf32> to vector<1x128xf32>
    %30 = vector.broadcast %29 : vector<1x128xf32> to vector<16x128xf32>
    %31 = arith.addf %28, %30 : vector<16x128xf32>
    %c0_10 = arith.constant 0 : index
    %c0_11 = arith.constant 0 : index
    %32 = vector.load %arg2[%c0_10, %c0_11] : memref<16x16xf32, #tpu.memory_space<vmem>>, vector<16x16xf32>
    %33 = vector.extract_strided_slice %31 {offsets = [0, 0], sizes = [16, 16], strides = [1, 1]} : vector<16x128xf32> to vector<16x16xf32>
    %34 = vector.extract_strided_slice %31 {offsets = [0, 32], sizes = [16, 16], strides = [1, 1]} : vector<16x128xf32> to vector<16x16xf32>
    %35 = vector.extract_strided_slice %31 {offsets = [0, 64], sizes = [16, 16], strides = [1, 1]} : vector<16x128xf32> to vector<16x16xf32>
    %36 = arith.truncf %33 : vector<16x16xf32> to vector<16x16xbf16>
    %37 = arith.truncf %34 : vector<16x16xf32> to vector<16x16xbf16>
    %cst_12 = arith.constant dense<0.000000e+00> : vector<16x16xf32>
    %38 = tpu.matmul %36, %37, %cst_12 {dimension_numbers = #tpu.dot_dimension_numbers<[1], [1], [0], [0], [0, 0, 1, 0], [], []>} : vector<16x16xbf16>, vector<16x16xbf16>, vector<16x16xf32> -> vector<16x16xf32>
    %cst_13 = arith.constant 2.500000e-01 : f32
    %39 = vector.broadcast %cst_13 : f32 to vector<16x16xf32>
    %40 = arith.mulf %38, %39 : vector<16x16xf32>
    %41 = arith.addf %40, %32 : vector<16x16xf32>
    %cst_14 = arith.constant dense<0xFF800000> : vector<16xf32>
    %42 = vector.multi_reduction <maximumf>, %41, %cst_14 [1] : vector<16x16xf32> to vector<16xf32>
    %43 = vector.shape_cast %42 : vector<16xf32> to vector<16x1xf32>
    %44 = vector.broadcast %43 : vector<16x1xf32> to vector<16x16xf32>
    %45 = arith.subf %41, %44 : vector<16x16xf32>
    %46 = math.exp %45 : vector<16x16xf32>
    %cst_15 = arith.constant dense<0.000000e+00> : vector<16xf32>
    %47 = vector.multi_reduction <add>, %46, %cst_15 [1] : vector<16x16xf32> to vector<16xf32>
    %48 = vector.shape_cast %47 : vector<16xf32> to vector<16x1xf32>
    %49 = tpu.reciprocal %48 {approx = true} : vector<16x1xf32> -> vector<16x1xf32>
    %50 = vector.broadcast %49 : vector<16x1xf32> to vector<16x16xf32>
    %51 = arith.mulf %46, %50 : vector<16x16xf32>
    %52 = arith.truncf %51 : vector<16x16xf32> to vector<16x16xbf16>
    %53 = arith.truncf %35 : vector<16x16xf32> to vector<16x16xbf16>
    %cst_16 = arith.constant dense<0.000000e+00> : vector<16x16xf32>
    %54 = tpu.matmul %52, %53, %cst_16 {dimension_numbers = #tpu.dot_dimension_numbers<[1], [0], [0], [1], [0, 0, 1, 1], [], []>} : vector<16x16xbf16>, vector<16x16xbf16>, vector<16x16xf32> -> vector<16x16xf32>
    %55 = vector.extract_strided_slice %31 {offsets = [0, 16], sizes = [16, 16], strides = [1, 1]} : vector<16x128xf32> to vector<16x16xf32>
    %56 = vector.extract_strided_slice %31 {offsets = [0, 48], sizes = [16, 16], strides = [1, 1]} : vector<16x128xf32> to vector<16x16xf32>
    %57 = vector.extract_strided_slice %31 {offsets = [0, 80], sizes = [16, 16], strides = [1, 1]} : vector<16x128xf32> to vector<16x16xf32>
    %58 = arith.truncf %55 : vector<16x16xf32> to vector<16x16xbf16>
    %59 = arith.truncf %56 : vector<16x16xf32> to vector<16x16xbf16>
    %cst_17 = arith.constant dense<0.000000e+00> : vector<16x16xf32>
    %60 = tpu.matmul %58, %59, %cst_17 {dimension_numbers = #tpu.dot_dimension_numbers<[1], [1], [0], [0], [0, 0, 1, 0], [], []>} : vector<16x16xbf16>, vector<16x16xbf16>, vector<16x16xf32> -> vector<16x16xf32>
    %cst_18 = arith.constant 2.500000e-01 : f32
    %61 = vector.broadcast %cst_18 : f32 to vector<16x16xf32>
    %62 = arith.mulf %60, %61 : vector<16x16xf32>
    %63 = arith.addf %62, %32 : vector<16x16xf32>
    %cst_19 = arith.constant dense<0xFF800000> : vector<16xf32>
    %64 = vector.multi_reduction <maximumf>, %63, %cst_19 [1] : vector<16x16xf32> to vector<16xf32>
    %65 = vector.shape_cast %64 : vector<16xf32> to vector<16x1xf32>
    %66 = vector.broadcast %65 : vector<16x1xf32> to vector<16x16xf32>
    %67 = arith.subf %63, %66 : vector<16x16xf32>
    %68 = math.exp %67 : vector<16x16xf32>
    %cst_20 = arith.constant dense<0.000000e+00> : vector<16xf32>
    %69 = vector.multi_reduction <add>, %68, %cst_20 [1] : vector<16x16xf32> to vector<16xf32>
    %70 = vector.shape_cast %69 : vector<16xf32> to vector<16x1xf32>
    %71 = tpu.reciprocal %70 {approx = true} : vector<16x1xf32> -> vector<16x1xf32>
    %72 = vector.broadcast %71 : vector<16x1xf32> to vector<16x16xf32>
    %73 = arith.mulf %68, %72 : vector<16x16xf32>
    %74 = arith.truncf %73 : vector<16x16xf32> to vector<16x16xbf16>
    %75 = arith.truncf %57 : vector<16x16xf32> to vector<16x16xbf16>
    %cst_21 = arith.constant dense<0.000000e+00> : vector<16x16xf32>
    %76 = tpu.matmul %74, %75, %cst_21 {dimension_numbers = #tpu.dot_dimension_numbers<[1], [0], [0], [1], [0, 0, 1, 1], [], []>} : vector<16x16xbf16>, vector<16x16xbf16>, vector<16x16xf32> -> vector<16x16xf32>
    %77 = tpu.concatenate %54, %76 in 1 : vector<16x16xf32>, vector<16x16xf32> -> vector<16x32xf32>
    %c32 = arith.constant 32 : index
    %c0_22 = arith.constant 0 : index
    %78 = vector.load %arg7[%c32, %c0_22] : memref<592x128xbf16, #tpu.memory_space<vmem>>, vector<32x32xbf16>
    %79 = arith.truncf %77 : vector<16x32xf32> to vector<16x32xbf16>
    %cst_23 = arith.constant dense<0.000000e+00> : vector<16x32xf32>
    %80 = tpu.matmul %79, %78, %cst_23 {dimension_numbers = #tpu.dot_dimension_numbers<[1], [0], [0], [1], [0, 0, 1, 1], [], []>} : vector<16x32xbf16>, vector<32x32xbf16>, vector<16x32xf32> -> vector<16x32xf32>
    %81 = vector.extract_strided_slice %0 {offsets = [3, 0], sizes = [1, 32], strides = [1, 1]} : vector<16x128xf32> to vector<1x32xf32>
    %82 = vector.broadcast %81 : vector<1x32xf32> to vector<16x32xf32>
    %83 = arith.addf %80, %82 : vector<16x32xf32>
    %84 = arith.addf %83, %25 : vector<16x32xf32>
    %85 = vector.extract_strided_slice %0 {offsets = [4, 0], sizes = [1, 32], strides = [1, 1]} : vector<16x128xf32> to vector<1x32xf32>
    %86 = vector.extract_strided_slice %0 {offsets = [5, 0], sizes = [1, 32], strides = [1, 1]} : vector<16x128xf32> to vector<1x32xf32>
    %cst_24 = arith.constant dense<0.000000e+00> : vector<16xf32>
    %87 = vector.multi_reduction <add>, %84, %cst_24 [1] : vector<16x32xf32> to vector<16xf32>
    %88 = vector.shape_cast %87 : vector<16xf32> to vector<16x1xf32>
    %cst_25 = arith.constant 3.200000e+01 : f32
    %89 = vector.broadcast %cst_25 : f32 to vector<16x1xf32>
    %90 = arith.divf %88, %89 : vector<16x1xf32>
    %91 = vector.broadcast %90 : vector<16x1xf32> to vector<16x32xf32>
    %92 = arith.subf %84, %91 : vector<16x32xf32>
    %93 = arith.mulf %92, %92 : vector<16x32xf32>
    %cst_26 = arith.constant dense<0.000000e+00> : vector<16xf32>
    %94 = vector.multi_reduction <add>, %93, %cst_26 [1] : vector<16x32xf32> to vector<16xf32>
    %95 = vector.shape_cast %94 : vector<16xf32> to vector<16x1xf32>
    %cst_27 = arith.constant 3.200000e+01 : f32
    %96 = vector.broadcast %cst_27 : f32 to vector<16x1xf32>
    %97 = arith.divf %95, %96 : vector<16x1xf32>
    %98 = vector.broadcast %90 : vector<16x1xf32> to vector<16x32xf32>
    %99 = arith.subf %84, %98 : vector<16x32xf32>
    %cst_28 = arith.constant 9.99999996E-13 : f32
    %100 = vector.broadcast %cst_28 : f32 to vector<16x1xf32>
    %101 = arith.addf %97, %100 : vector<16x1xf32>
    %102 = math.rsqrt %101 : vector<16x1xf32>
    %103 = vector.broadcast %102 : vector<16x1xf32> to vector<16x32xf32>
    %104 = arith.mulf %99, %103 : vector<16x32xf32>
    %105 = vector.broadcast %85 : vector<1x32xf32> to vector<16x32xf32>
    %106 = arith.mulf %104, %105 : vector<16x32xf32>
    %107 = vector.broadcast %86 : vector<1x32xf32> to vector<16x32xf32>
    %108 = arith.addf %106, %107 : vector<16x32xf32>
    %c64 = arith.constant 64 : index
    %c0_29 = arith.constant 0 : index
    %109 = vector.load %arg7[%c64, %c0_29] : memref<592x128xbf16, #tpu.memory_space<vmem>>, vector<32x64xbf16>
    %110 = arith.truncf %108 : vector<16x32xf32> to vector<16x32xbf16>
    %cst_30 = arith.constant dense<0.000000e+00> : vector<16x64xf32>
    %111 = tpu.matmul %110, %109, %cst_30 {dimension_numbers = #tpu.dot_dimension_numbers<[1], [0], [0], [1], [0, 0, 1, 1], [], []>} : vector<16x32xbf16>, vector<32x64xbf16>, vector<16x64xf32> -> vector<16x64xf32>
    %112 = vector.extract_strided_slice %0 {offsets = [6, 0], sizes = [1, 64], strides = [1, 1]} : vector<16x128xf32> to vector<1x64xf32>
    %113 = vector.broadcast %112 : vector<1x64xf32> to vector<16x64xf32>
    %114 = arith.addf %111, %113 : vector<16x64xf32>
    %115 = arith.mulf %114, %114 : vector<16x64xf32>
    %116 = arith.mulf %114, %115 : vector<16x64xf32>
    %cst_31 = arith.constant 4.471500e-02 : f32
    %117 = vector.broadcast %cst_31 : f32 to vector<16x64xf32>
    %118 = arith.mulf %117, %116 : vector<16x64xf32>
    %119 = arith.addf %114, %118 : vector<16x64xf32>
    %cst_32 = arith.constant 0.797884583 : f32
    %120 = vector.broadcast %cst_32 : f32 to vector<16x64xf32>
    %121 = arith.mulf %120, %119 : vector<16x64xf32>
    %122 = math.tanh %121 : vector<16x64xf32>
    %cst_33 = arith.constant 1.000000e+00 : f32
    %123 = vector.broadcast %cst_33 : f32 to vector<16x64xf32>
    %124 = arith.addf %123, %122 : vector<16x64xf32>
    %cst_34 = arith.constant 5.000000e-01 : f32
    %125 = vector.broadcast %cst_34 : f32 to vector<16x64xf32>
    %126 = arith.mulf %125, %124 : vector<16x64xf32>
    %127 = arith.mulf %114, %126 : vector<16x64xf32>
    %c96 = arith.constant 96 : index
    %c0_35 = arith.constant 0 : index
    %128 = vector.load %arg7[%c96, %c0_35] : memref<592x128xbf16, #tpu.memory_space<vmem>>, vector<64x32xbf16>
    %129 = arith.truncf %127 : vector<16x64xf32> to vector<16x64xbf16>
    %cst_36 = arith.constant dense<0.000000e+00> : vector<16x32xf32>
    %130 = tpu.matmul %129, %128, %cst_36 {dimension_numbers = #tpu.dot_dimension_numbers<[1], [0], [0], [1], [0, 0, 1, 1], [], []>} : vector<16x64xbf16>, vector<64x32xbf16>, vector<16x32xf32> -> vector<16x32xf32>
    %131 = vector.extract_strided_slice %0 {offsets = [7, 0], sizes = [1, 32], strides = [1, 1]} : vector<16x128xf32> to vector<1x32xf32>
    %132 = vector.broadcast %131 : vector<1x32xf32> to vector<16x32xf32>
    %133 = arith.addf %130, %132 : vector<16x32xf32>
    %134 = arith.addf %133, %108 : vector<16x32xf32>
    %135 = vector.extract_strided_slice %0 {offsets = [8, 0], sizes = [1, 32], strides = [1, 1]} : vector<16x128xf32> to vector<1x32xf32>
    %136 = vector.extract_strided_slice %0 {offsets = [9, 0], sizes = [1, 32], strides = [1, 1]} : vector<16x128xf32> to vector<1x32xf32>
    %cst_37 = arith.constant dense<0.000000e+00> : vector<16xf32>
    %137 = vector.multi_reduction <add>, %134, %cst_37 [1] : vector<16x32xf32> to vector<16xf32>
    %138 = vector.shape_cast %137 : vector<16xf32> to vector<16x1xf32>
    %cst_38 = arith.constant 3.200000e+01 : f32
    %139 = vector.broadcast %cst_38 : f32 to vector<16x1xf32>
    %140 = arith.divf %138, %139 : vector<16x1xf32>
    %141 = vector.broadcast %140 : vector<16x1xf32> to vector<16x32xf32>
    %142 = arith.subf %134, %141 : vector<16x32xf32>
    %143 = arith.mulf %142, %142 : vector<16x32xf32>
    %cst_39 = arith.constant dense<0.000000e+00> : vector<16xf32>
    %144 = vector.multi_reduction <add>, %143, %cst_39 [1] : vector<16x32xf32> to vector<16xf32>
    %145 = vector.shape_cast %144 : vector<16xf32> to vector<16x1xf32>
    %cst_40 = arith.constant 3.200000e+01 : f32
    %146 = vector.broadcast %cst_40 : f32 to vector<16x1xf32>
    %147 = arith.divf %145, %146 : vector<16x1xf32>
    %148 = vector.broadcast %140 : vector<16x1xf32> to vector<16x32xf32>
    %149 = arith.subf %134, %148 : vector<16x32xf32>
    %cst_41 = arith.constant 9.99999996E-13 : f32
    %150 = vector.broadcast %cst_41 : f32 to vector<16x1xf32>
    %151 = arith.addf %147, %150 : vector<16x1xf32>
    %152 = math.rsqrt %151 : vector<16x1xf32>
    %153 = vector.broadcast %152 : vector<16x1xf32> to vector<16x32xf32>
    %154 = arith.mulf %149, %153 : vector<16x32xf32>
    %155 = vector.broadcast %135 : vector<1x32xf32> to vector<16x32xf32>
    %156 = arith.mulf %154, %155 : vector<16x32xf32>
    %157 = vector.broadcast %136 : vector<1x32xf32> to vector<16x32xf32>
    %158 = arith.addf %156, %157 : vector<16x32xf32>
    %c0_42 = arith.constant 0 : index
    %c0_43 = arith.constant 0 : index
    %159 = vector.load %arg3[%c0_42, %c0_43] : memref<320x128xbf16, #tpu.memory_space<vmem>>, vector<320x128xbf16>
    %c160 = arith.constant 160 : index
    %c0_44 = arith.constant 0 : index
    %160 = vector.load %arg7[%c160, %c0_44] : memref<592x128xbf16, #tpu.memory_space<vmem>>, vector<128x64xbf16>
    %cst_45 = arith.constant dense<0.000000e+00> : vector<320x64xf32>
    %161 = tpu.matmul %159, %160, %cst_45 {dimension_numbers = #tpu.dot_dimension_numbers<[1], [0], [0], [1], [0, 0, 1, 1], [], []>} : vector<320x128xbf16>, vector<128x64xbf16>, vector<320x64xf32> -> vector<320x64xf32>
    %162 = vector.extract_strided_slice %0 {offsets = [10, 0], sizes = [1, 64], strides = [1, 1]} : vector<16x128xf32> to vector<1x64xf32>
    %163 = vector.broadcast %162 : vector<1x64xf32> to vector<320x64xf32>
    %164 = arith.addf %161, %163 : vector<320x64xf32>
    %cst_46 = arith.constant 0.000000e+00 : f32
    %165 = vector.broadcast %cst_46 : f32 to vector<320x64xf32>
    %166 = arith.maximumf %164, %165 : vector<320x64xf32>
    %167 = vector.shape_cast %166 : vector<320x64xf32> to vector<20x16x64xf32>
    %cst_47 = arith.constant dense<0xFF800000> : vector<16x64xf32>
    %168 = vector.multi_reduction <maximumf>, %167, %cst_47 [0] : vector<20x16x64xf32> to vector<16x64xf32>
    %c0_48 = arith.constant 0 : index
    %c0_49 = arith.constant 0 : index
    %169 = vector.load %arg4[%c0_48, %c0_49] : memref<2x16xf32, #tpu.memory_space<vmem>>, vector<2x16xf32>
    %c288 = arith.constant 288 : index
    %c0_50 = arith.constant 0 : index
    %170 = vector.load %arg7[%c288, %c0_50] : memref<592x128xbf16, #tpu.memory_space<vmem>>, vector<16x64xbf16>
    %171 = arith.truncf %169 : vector<2x16xf32> to vector<2x16xbf16>
    %cst_51 = arith.constant dense<0.000000e+00> : vector<2x64xf32>
    %172 = tpu.matmul %171, %170, %cst_51 {dimension_numbers = #tpu.dot_dimension_numbers<[1], [0], [0], [1], [0, 0, 1, 1], [], []>} : vector<2x16xbf16>, vector<16x64xbf16>, vector<2x64xf32> -> vector<2x64xf32>
    %173 = vector.extract_strided_slice %0 {offsets = [11, 0], sizes = [1, 64], strides = [1, 1]} : vector<16x128xf32> to vector<1x64xf32>
    %174 = vector.broadcast %173 : vector<1x64xf32> to vector<2x64xf32>
    %175 = arith.addf %172, %174 : vector<2x64xf32>
    %c304 = arith.constant 304 : index
    %c0_52 = arith.constant 0 : index
    %176 = vector.load %arg7[%c304, %c0_52] : memref<592x128xbf16, #tpu.memory_space<vmem>>, vector<32x128xbf16>
    %177 = arith.truncf %158 : vector<16x32xf32> to vector<16x32xbf16>
    %cst_53 = arith.constant dense<0.000000e+00> : vector<16x128xf32>
    %178 = tpu.matmul %177, %176, %cst_53 {dimension_numbers = #tpu.dot_dimension_numbers<[1], [0], [0], [1], [0, 0, 1, 1], [], []>} : vector<16x32xbf16>, vector<32x128xbf16>, vector<16x128xf32> -> vector<16x128xf32>
    %c336 = arith.constant 336 : index
    %c0_54 = arith.constant 0 : index
    %179 = vector.load %arg7[%c336, %c0_54] : memref<592x128xbf16, #tpu.memory_space<vmem>>, vector<64x128xbf16>
    %180 = arith.truncf %168 : vector<16x64xf32> to vector<16x64xbf16>
    %cst_55 = arith.constant dense<0.000000e+00> : vector<16x128xf32>
    %181 = tpu.matmul %180, %179, %cst_55 {dimension_numbers = #tpu.dot_dimension_numbers<[1], [0], [0], [1], [0, 0, 1, 1], [], []>} : vector<16x64xbf16>, vector<64x128xbf16>, vector<16x128xf32> -> vector<16x128xf32>
    %182 = arith.addf %178, %181 : vector<16x128xf32>
    %183 = vector.extract_strided_slice %0 {offsets = [12, 0], sizes = [1, 128], strides = [1, 1]} : vector<16x128xf32> to vector<1x128xf32>
    %184 = vector.broadcast %183 : vector<1x128xf32> to vector<16x128xf32>
    %185 = arith.addf %182, %184 : vector<16x128xf32>
    %c400 = arith.constant 400 : index
    %c0_56 = arith.constant 0 : index
    %186 = vector.load %arg7[%c400, %c0_56] : memref<592x128xbf16, #tpu.memory_space<vmem>>, vector<64x128xbf16>
    %187 = arith.truncf %175 : vector<2x64xf32> to vector<2x64xbf16>
    %cst_57 = arith.constant dense<0.000000e+00> : vector<2x128xf32>
    %188 = tpu.matmul %187, %186, %cst_57 {dimension_numbers = #tpu.dot_dimension_numbers<[1], [0], [0], [1], [0, 0, 1, 1], [], []>} : vector<2x64xbf16>, vector<64x128xbf16>, vector<2x128xf32> -> vector<2x128xf32>
    %c0_58 = arith.constant 0 : index
    %c0_59 = arith.constant 0 : index
    %189 = vector.load %arg5[%c0_58, %c0_59] : memref<2x128xf32, #tpu.memory_space<vmem>>, vector<2x128xf32>
    %c464 = arith.constant 464 : index
    %c0_60 = arith.constant 0 : index
    %190 = vector.load %arg7[%c464, %c0_60] : memref<592x128xbf16, #tpu.memory_space<vmem>>, vector<128x128xbf16>
    %191 = arith.truncf %189 : vector<2x128xf32> to vector<2x128xbf16>
    %cst_61 = arith.constant dense<0.000000e+00> : vector<2x128xf32>
    %192 = tpu.matmul %191, %190, %cst_61 {dimension_numbers = #tpu.dot_dimension_numbers<[1], [0], [0], [1], [0, 0, 1, 1], [], []>} : vector<2x128xbf16>, vector<128x128xbf16>, vector<2x128xf32> -> vector<2x128xf32>
    %193 = arith.addf %188, %192 : vector<2x128xf32>
    %194 = vector.shape_cast %185 : vector<16x128xf32> to vector<2x8x128xf32>
    %195 = vector.shape_cast %193 : vector<2x128xf32> to vector<2x1x128xf32>
    %196 = vector.broadcast %195 : vector<2x1x128xf32> to vector<2x8x128xf32>
    %197 = arith.addf %194, %196 : vector<2x8x128xf32>
    %c0_62 = arith.constant 0 : index
    %c0_63 = arith.constant 0 : index
    %c0_64 = arith.constant 0 : index
    %198 = vector.load %arg8[%c0_62, %c0_63, %c0_64] : memref<2x8x128xf32, #tpu.memory_space<vmem>>, vector<2x8x128xf32>
    tpu.vector_store %arg8[%c0_62, %c0_63, %c0_64], %197 {strides = array<i32>} : memref<2x8x128xf32, #tpu.memory_space<vmem>>, vector<2x8x128xf32>,
    return
  }
  func.func @transform_0(%arg0: i32) -> (i32, i32) {
    %c0_i32 = arith.constant 0 : i32
    %c0_i32_0 = arith.constant 0 : i32
    %c0_i32_1 = arith.constant 0 : i32
    return %c0_i32, %c0_i32_0 : i32, i32
  }
  func.func @transform_1(%arg0: i32) -> (i32, i32) {
    %c0_i32 = arith.constant 0 : i32
    %c0_i32_0 = arith.constant 0 : i32
    %c0_i32_1 = arith.constant 0 : i32
    return %c0_i32, %c0_i32_0 : i32, i32
  }
  func.func @transform_2(%arg0: i32) -> (i32, i32) {
    %c0_i32 = arith.constant 0 : i32
    %c0_i32_0 = arith.constant 0 : i32
    %c0_i32_1 = arith.constant 0 : i32
    return %c0_i32, %c0_i32_0 : i32, i32
  }
  func.func @transform_3(%arg0: i32) -> (i32, i32) {
    %c0_i32 = arith.constant 0 : i32
    %c0_i32_0 = arith.constant 0 : i32
    %c0_i32_1 = arith.constant 0 : i32
    return %c0_i32, %c0_i32_0 : i32, i32
  }
  func.func @transform_4(%arg0: i32) -> (i32, i32) {
    %c0_i32 = arith.constant 0 : i32
    %c0_i32_0 = arith.constant 0 : i32
    %c0_i32_1 = arith.constant 0 : i32
    return %c0_i32, %c0_i32_0 : i32, i32
  }
  func.func @transform_5(%arg0: i32) -> (i32, i32) {
    %c0_i32 = arith.constant 0 : i32
    %c0_i32_0 = arith.constant 0 : i32
    %c0_i32_1 = arith.constant 0 : i32
    return %c0_i32, %c0_i32_0 : i32, i32
  }
  func.func @transform_6(%arg0: i32) -> (i32, i32) {
    %c0_i32 = arith.constant 0 : i32
    %c0_i32_0 = arith.constant 0 : i32
    %c0_i32_1 = arith.constant 0 : i32
    return %c0_i32, %c0_i32_0 : i32, i32
  }
  func.func @transform_7(%arg0: i32) -> (i32, i32, i32) {
    %c0_i32 = arith.constant 0 : i32
    %c0_i32_0 = arith.constant 0 : i32
    %c0_i32_1 = arith.constant 0 : i32
    %c0_i32_2 = arith.constant 0 : i32
    return %c0_i32, %c0_i32_0, %c0_i32_1 : i32, i32, i32
  }
}

</mosaic_0001>

<llo_original>
// kernel: forward.1
$region0: #{forward.1}
  #allocation0 [shape = 'u32[]', space=smem, size = 0x4, offset = 0x4, fixed_abs, tag = 'smem constant byte address 0x4 - core index']
  #allocation1 [shape = 'u32[72,128]{1,0:T(1,128)}', space=vmem, size = 0x9000, scoped, tag = 'internal scratch']
  %s0 = inlined_call_operand.vmem [shape: f32[16,32], index: 0, kind: input, shape index: {}]
  %s1 = inlined_call_operand.vmem [shape: f32[16,16], index: 1, kind: input, shape index: {}]
  %s2 = inlined_call_operand.vmem [shape: bf16[320,128], index: 2, kind: input, shape index: {}]
  %s3 = inlined_call_operand.vmem [shape: f32[2,16], index: 3, kind: input, shape index: {}]
  %s4 = inlined_call_operand.vmem [shape: f32[2,128], index: 4, kind: input, shape index: {}]
  %s5 = inlined_call_operand.vmem [shape: f32[16,128], index: 5, kind: input, shape index: {}]
  %s6 = inlined_call_operand.vmem [shape: bf16[592,128], index: 6, kind: input, shape index: {}]
  %s7 = inlined_call_operand.vmem [shape: f32[2,8,128], index: 7, kind: output, shape index: {}]
  %s8 = sld [smem:[#allocation0]]
  $region38: #{forward.1} parent=0
    _
  %s10 = ssub.s32 1, %s8
  %s11 = scalar_select 0, %s10, %s8
  // Predicated region
  $region2: #{forward.1} parent=0 // pred_check
    _
  $region3: #{forward.1} parent=0 // pred_check_branch
    %13 = sbr.rel (0) target = $region5
  $region4: #{forward.1} parent=0 // pred_region
    _
  $region5: #{forward.1} parent=0 // pred_fallthru
    _
  // Predicated region
  $region6: #{forward.1} parent=0 // pred_check
    _
  $region7: #{forward.1} parent=0 // pred_check_branch
    %15 = sbr.rel (0) target = $region9
  $region8: #{forward.1} parent=0 // pred_region
    _
  $region9: #{forward.1} parent=0 // pred_fallthru
    _
  // Predicated region
  $region10: #{forward.1} parent=0 // pred_check
    _
  $region11: #{forward.1} parent=0 // pred_check_branch
    %17 = sbr.rel (0) target = $region13
  $region12: #{forward.1} parent=0 // pred_region
    _
  $region13: #{forward.1} parent=0 // pred_fallthru
    _
  // Predicated region
  $region14: #{forward.1} parent=0 // pred_check
    _
  $region15: #{forward.1} parent=0 // pred_check_branch
    %19 = sbr.rel (0) target = $region17
  $region16: #{forward.1} parent=0 // pred_region
    _
  $region17: #{forward.1} parent=0 // pred_fallthru
    _
  // Predicated region
  $region18: #{forward.1} parent=0 // pred_check
    _
  $region19: #{forward.1} parent=0 // pred_check_branch
    %21 = sbr.rel (0) target = $region21
  $region20: #{forward.1} parent=0 // pred_region
    _
  $region21: #{forward.1} parent=0 // pred_fallthru
    _
  // Predicated region
  $region22: #{forward.1} parent=0 // pred_check
    _
  $region23: #{forward.1} parent=0 // pred_check_branch
    %23 = sbr.rel (0) target = $region25
  $region24: #{forward.1} parent=0 // pred_region
    _
  $region25: #{forward.1} parent=0 // pred_fallthru
    _
  // Predicated region
  $region26: #{forward.1} parent=0 // pred_check
    _
  $region27: #{forward.1} parent=0 // pred_check_branch
    %25 = sbr.rel (0) target = $region29
  $region28: #{forward.1} parent=0 // pred_region
    _
  $region29: #{forward.1} parent=0 // pred_fallthru
    _
  %v27 = vld [vmem:[%s5] sm:$0xff]
  %v28 = vld [vmem:[%s5 + $0x8] sm:$0xff]
  %v29 = vld [vmem:[%s0] sm:$0xff]
  %v30 = vld [vmem:[%s0 + $0x8] sm:$0xff]
  %vm31 = vcmask 261120
  %v32 = vsel %vm31, %v29, 0.0
  %33 = vadd.xlane.f32.xlu0 %v32
  %v34 = vpop.xlane.xlu0 %33
  %v35 = vsel %vm31, %v30, 0.0
  %36 = vadd.xlane.f32.xlu0 %v35
  %v37 = vpop.xlane.xlu0 %36
  %v38 = vrcp.pop 32.0
  %v39 = vmul.f32 32.0, %v38
  %v40 = vsub.f32 1.0, %v39
  %v41 = vmul.f32 %v38, %v40
  %v42 = vadd.f32 %v38, %v41
  %vm43 = vweird.f32 %v38
  %v44 = vsel %vm43, %v38, %v42
  %v45 = vmul.f32 %v34, %v44
  %v46 = vmul.f32 %v37, %v44
  %v47 = vsub.f32 %v29, %v45
  %v48 = vsub.f32 %v30, %v46
  %v49 = vmul.f32 %v47, %v47
  %v50 = vmul.f32 %v48, %v48
  %v51 = vsel %vm31, %v49, 0.0
  %52 = vadd.xlane.f32.xlu0 %v51
  %v53 = vpop.xlane.xlu0 %52
  %v54 = vsel %vm31, %v50, 0.0
  %55 = vadd.xlane.f32.xlu0 %v54
  %v56 = vpop.xlane.xlu0 %55
  %v57 = vmul.f32 %v53, %v44
  %v58 = vmul.f32 %v56, %v44
  %v59 = vadd.f32 %v57, 1e-12
  %v60 = vadd.f32 %v58, 1e-12
  %v61 = vrsqrt.pop %v59
  %v62 = vmul.f32 %v61, %v59
  %v63 = vmul.f32 %v62, %v61
  %v64 = vmul.f32 0.5, %v63
  %v65 = vsub.f32 1.5, %v64
  %v66 = vmul.f32 %v61, %v65
  %vm67 = vweird.f32 %v59
  %vm68 = vweird.f32 %v61
  %vm69 = vmor %vm67, %vm68
  %v70 = vsel %vm69, %v61, %v66
  %v71 = vrsqrt.pop %v60
  %v72 = vmul.f32 %v71, %v60
  %v73 = vmul.f32 %v72, %v71
  %v74 = vmul.f32 0.5, %v73
  %v75 = vsub.f32 1.5, %v74
  %v76 = vmul.f32 %v71, %v75
  %vm77 = vweird.f32 %v60
  %vm78 = vweird.f32 %v71
  %vm79 = vmor %vm77, %vm78
  %v80 = vsel %vm79, %v71, %v76
  %v81 = vmul.f32 %v47, %v70
  %v82 = vmul.f32 %v48, %v80
  %v83 = vperm.slane %v27, 0
  %v84 = vmul.f32 %v81, %v83
  %v85 = vmul.f32 %v82, %v83
  %v86 = vperm.slane %v27, 1
  %v87 = vadd.f32 %v84, %v86
  %v88 = vadd.f32 %v85, %v86
  %v89 = vld [vmem:[%s6] sm:$0xf]
  %v90 = vld [vmem:[%s6 + $0x4] sm:$0xf]
  %v91 = vld [vmem:[%s6 + $0x8] sm:$0xf]
  %v92 = vld [vmem:[%s6 + $0xc] sm:$0xf]
  %v93 = vpack.c.bf16 %v88, %v87
  %v94 = vperm.slane %v27, 2
  %v99 = vunpack.c.l.b16 %v89
  %v100 = vunpack.c.l.b16 %v90
  %v101 = vunpack.c.l.b16 %v91
  %v102 = vunpack.c.l.b16 %v92
  %v103 = vpack.c.b16 %v100, %v99
  %v104 = vpack.c.b16 %v102, %v101
  %v108 = vsel %vm31, %v93, 0
  %110 = vmatpush.bf16.msra.mxu0 0
  %111 = vmatpush.bf16.msra.mxu0 0
  %112 = vmatpush.bf16.msra.mxu0 0
  %113 = vmatpush.bf16.msra.mxu0 0
  %114 = vmatpush.bf16.msra.mxu0 0
  %115 = vmatpush.bf16.msra.mxu0 0
  %116 = vmatpush.bf16.msra.mxu0 %v104
  %117 = vmatpush.bf16.msra.mxu0 %v103
  %118 = vmatmul.bf16.gmra.mxu0 %v108
  %v119 = vpop.f32.mrf.mxu0
  %v120 = vadd.f32 %v94, %v119
  %v121 = vpop.f32.mrf.mxu0
  %v122 = vadd.f32 %v94, %v121
  %123 = vdwg.mxu0
  %v124 = vld [vmem:[%s1] sm:$0xff]
  %v125 = vld [vmem:[%s1 + $0x8] sm:$0xff]
  %v126 = vpack.c.bf16 %v122, %v120
  %128 = vrot.lane.b32.xlu0 %v126, 96
  %v129 = vpop.permute.xlu0 %128
  %vm130 = vcmask 130048
  %v132 = vsel %vm130, %v126, 0
  %v135 = vsel %vm130, %v129, 0
  %137 = vmatpush.bf16.xpose.msra.mxu0 0
  %138 = vmatpush.bf16.xpose.msra.mxu0 0
  %139 = vmatpush.bf16.xpose.msra.mxu0 0
  %140 = vmatpush.bf16.xpose.msra.mxu0 0
  %141 = vmatpush.bf16.xpose.msra.mxu0 0
  %142 = vmatpush.bf16.xpose.msra.mxu0 0
  %143 = vmatpush.bf16.xpose.msra.mxu0 0
  %144 = vmatpush.bf16.xpose.msra.mxu0 %v135
  %145 = vmatmul.bf16.gmra.mxu0 %v132
  %v146 = vpop.f32.mrf.mxu0
  %v147 = vadd.f32 0.0, %v146
  %v148 = vpop.f32.mrf.mxu0
  %v149 = vadd.f32 0.0, %v148
  %150 = vdwg.mxu0
  %v151 = vmul.f32 %v147, 0.25
  %v152 = vmul.f32 %v149, 0.25
  %v153 = vadd.f32 %v151, %v124
  %v154 = vadd.f32 %v152, %v125
  %v155 = vsel %vm130, %v153, -inf
  %156 = vmax.xlane.f32.xlu0 %v155
  %v157 = vpop.xlane.xlu0 %156
  %v158 = vsel %vm130, %v154, -inf
  %159 = vmax.xlane.f32.xlu0 %v158
  %v160 = vpop.xlane.xlu0 %159
  %v161 = vsub.f32 %v153, %v157
  %v162 = vsub.f32 %v154, %v160
  %v163 = vmul.f32 %v161, 1.442695
  %v164 = vpow.pop %v163
  %v165 = vmul.f32 %v162, 1.442695
  %v166 = vpow.pop %v165
  %v167 = vsel %vm130, %v164, 0.0
  %168 = vadd.xlane.f32.xlu0 %v167
  %v169 = vpop.xlane.xlu0 %168
  %v170 = vsel %vm130, %v166, 0.0
  %171 = vadd.xlane.f32.xlu0 %v170
  %v172 = vpop.xlane.xlu0 %171
  %v173 = vrcp.pop %v169
  %v174 = vrcp.pop %v172
  %v175 = vmul.f32 %v164, %v173
  %v176 = vmul.f32 %v166, %v174
  %v177 = vpack.c.bf16 %v176, %v175
  %178 = vrot.lane.b32.xlu0 %v126, 64
  %v179 = vpop.permute.xlu0 %178
  %v182 = vsel %vm130, %v177, 0
  %184 = vmatpush.bf16.msra.mxu0 0
  %185 = vmatpush.bf16.msra.mxu0 0
  %186 = vmatpush.bf16.msra.mxu0 0
  %187 = vmatpush.bf16.msra.mxu0 0
  %188 = vmatpush.bf16.msra.mxu0 0
  %189 = vmatpush.bf16.msra.mxu0 0
  %190 = vmatpush.bf16.msra.mxu0 0
  %191 = vmatpush.bf16.msra.mxu0 %v179
  %192 = vmatmul.bf16.gmra.mxu0 %v182
  %v193 = vpop.f32.mrf.mxu0
  %v194 = vadd.f32 0.0, %v193
  %v195 = vpop.f32.mrf.mxu0
  %v196 = vadd.f32 0.0, %v195
  %197 = vdwg.mxu0
  %198 = vrot.lane.b32.xlu0 %v126, 112
  %v199 = vpop.permute.xlu0 %198
  %200 = vrot.lane.b32.xlu0 %v126, 80
  %v201 = vpop.permute.xlu0 %200
  %v203 = vsel %vm130, %v199, 0
  %v206 = vsel %vm130, %v201, 0
  %208 = vmatpush.bf16.xpose.msra.mxu0 0
  %209 = vmatpush.bf16.xpose.msra.mxu0 0
  %210 = vmatpush.bf16.xpose.msra.mxu0 0
  %211 = vmatpush.bf16.xpose.msra.mxu0 0
  %212 = vmatpush.bf16.xpose.msra.mxu0 0
  %213 = vmatpush.bf16.xpose.msra.mxu0 0
  %214 = vmatpush.bf16.xpose.msra.mxu0 0
  %215 = vmatpush.bf16.xpose.msra.mxu0 %v206
  %216 = vmatmul.bf16.gmra.mxu0 %v203
  %v217 = vpop.f32.mrf.mxu0
  %v218 = vadd.f32 0.0, %v217
  %v219 = vpop.f32.mrf.mxu0
  %v220 = vadd.f32 0.0, %v219
  %221 = vdwg.mxu0
  %v222 = vmul.f32 %v218, 0.25
  %v223 = vmul.f32 %v220, 0.25
  %v224 = vadd.f32 %v222, %v124
  %v225 = vadd.f32 %v223, %v125
  %v226 = vsel %vm130, %v224, -inf
  %227 = vmax.xlane.f32.xlu0 %v226
  %v228 = vpop.xlane.xlu0 %227
  %v229 = vsel %vm130, %v225, -inf
  %230 = vmax.xlane.f32.xlu0 %v229
  %v231 = vpop.xlane.xlu0 %230
  %v232 = vsub.f32 %v224, %v228
  %v233 = vsub.f32 %v225, %v231
  %v234 = vmul.f32 %v232, 1.442695
  %v235 = vpow.pop %v234
  %v236 = vmul.f32 %v233, 1.442695
  %v237 = vpow.pop %v236
  %v238 = vsel %vm130, %v235, 0.0
  %239 = vadd.xlane.f32.xlu0 %v238
  %v240 = vpop.xlane.xlu0 %239
  %v241 = vsel %vm130, %v237, 0.0
  %242 = vadd.xlane.f32.xlu0 %v241
  %v243 = vpop.xlane.xlu0 %242
  %v244 = vrcp.pop %v240
  %v245 = vrcp.pop %v243
  %v246 = vmul.f32 %v235, %v244
  %v247 = vmul.f32 %v237, %v245
  %v248 = vpack.c.bf16 %v247, %v246
  %249 = vrot.lane.b32.xlu0 %v126, 48
  %v250 = vpop.permute.xlu0 %249
  %v253 = vsel %vm130, %v248, 0
  %255 = vmatpush.bf16.msra.mxu0 0
  %256 = vmatpush.bf16.msra.mxu0 0
  %257 = vmatpush.bf16.msra.mxu0 0
  %258 = vmatpush.bf16.msra.mxu0 0
  %259 = vmatpush.bf16.msra.mxu0 0
  %260 = vmatpush.bf16.msra.mxu0 0
  %261 = vmatpush.bf16.msra.mxu0 0
  %262 = vmatpush.bf16.msra.mxu0 %v250
  %263 = vmatmul.bf16.gmra.mxu0 %v253
  %v264 = vpop.f32.mrf.mxu0
  %v265 = vadd.f32 0.0, %v264
  %v266 = vpop.f32.mrf.mxu0
  %v267 = vadd.f32 0.0, %v266
  %268 = vdwg.mxu0
  %271 = vrot.lane.b32.xlu0 %v265, 16
  %v272 = vpop.permute.xlu0 %271
  %273 = vrot.lane.b32.xlu0 %v267, 16
  %v274 = vpop.permute.xlu0 %273
  %v277 = vsel %vm130, %v194, %v272
  %v278 = vsel %vm130, %v196, %v274
  %v279 = vld [vmem:[%s6 + $0x10] sm:$0xf]
  %v280 = vld [vmem:[%s6 + $0x14] sm:$0xf]
  %v281 = vld [vmem:[%s6 + $0x18] sm:$0xf]
  %v282 = vld [vmem:[%s6 + $0x1c] sm:$0xf]
  %v283 = vpack.c.bf16 %v278, %v277
  %v284 = vperm.slane %v27, 3
  %v289 = vunpack.c.l.b16 %v279
  %v290 = vunpack.c.l.b16 %v280
  %v291 = vunpack.c.l.b16 %v281
  %v292 = vunpack.c.l.b16 %v282
  %v293 = vpack.c.b16 %v290, %v289
  %v294 = vpack.c.b16 %v292, %v291
  %v298 = vsel %vm31, %v283, 0
  %300 = vmatpush.bf16.msra.mxu0 0
  %301 = vmatpush.bf16.msra.mxu0 0
  %302 = vmatpush.bf16.msra.mxu0 0
  %303 = vmatpush.bf16.msra.mxu0 0
  %304 = vmatpush.bf16.msra.mxu0 0
  %305 = vmatpush.bf16.msra.mxu0 0
  %306 = vmatpush.bf16.msra.mxu0 %v294
  %307 = vmatpush.bf16.msra.mxu0 %v293
  %308 = vmatmul.bf16.gmra.mxu0 %v298
  %v309 = vpop.f32.mrf.mxu0
  %v310 = vadd.f32 %v284, %v309
  %v311 = vpop.f32.mrf.mxu0
  %v312 = vadd.f32 %v284, %v311
  %313 = vdwg.mxu0
  %v314 = vadd.f32 %v310, %v87
  %v315 = vadd.f32 %v312, %v88
  %v316 = vsel %vm31, %v314, 0.0
  %317 = vadd.xlane.f32.xlu0 %v316
  %v318 = vpop.xlane.xlu0 %317
  %v319 = vsel %vm31, %v315, 0.0
  %320 = vadd.xlane.f32.xlu0 %v319
  %v321 = vpop.xlane.xlu0 %320
  %v322 = vmul.f32 %v318, %v44
  %v323 = vmul.f32 %v321, %v44
  %v324 = vsub.f32 %v314, %v322
  %v325 = vsub.f32 %v315, %v323
  %v326 = vmul.f32 %v324, %v324
  %v327 = vmul.f32 %v325, %v325
  %v328 = vsel %vm31, %v326, 0.0
  %329 = vadd.xlane.f32.xlu0 %v328
  %v330 = vpop.xlane.xlu0 %329
  %v331 = vsel %vm31, %v327, 0.0
  %332 = vadd.xlane.f32.xlu0 %v331
  %v333 = vpop.xlane.xlu0 %332
  %v334 = vmul.f32 %v330, %v44
  %v335 = vmul.f32 %v333, %v44
  %v336 = vadd.f32 %v334, 1e-12
  %v337 = vadd.f32 %v335, 1e-12
  %v338 = vrsqrt.pop %v336
  %v339 = vmul.f32 %v338, %v336
  %v340 = vmul.f32 %v339, %v338
  %v341 = vmul.f32 0.5, %v340
  %v342 = vsub.f32 1.5, %v341
  %v343 = vmul.f32 %v338, %v342
  %vm344 = vweird.f32 %v336
  %vm345 = vweird.f32 %v338
  %vm346 = vmor %vm344, %vm345
  %v347 = vsel %vm346, %v338, %v343
  %v348 = vrsqrt.pop %v337
  %v349 = vmul.f32 %v348, %v337
  %v350 = vmul.f32 %v349, %v348
  %v351 = vmul.f32 0.5, %v350
  %v352 = vsub.f32 1.5, %v351
  %v353 = vmul.f32 %v348, %v352
  %vm354 = vweird.f32 %v337
  %vm355 = vweird.f32 %v348
  %vm356 = vmor %vm354, %vm355
  %v357 = vsel %vm356, %v348, %v353
  %v358 = vmul.f32 %v324, %v347
  %v359 = vmul.f32 %v325, %v357
  %v360 = vperm.slane %v27, 4
  %v361 = vmul.f32 %v358, %v360
  %v362 = vmul.f32 %v359, %v360
  %v363 = vperm.slane %v27, 5
  %v364 = vadd.f32 %v361, %v363
  %v365 = vadd.f32 %v362, %v363
  %v366 = vld [vmem:[%s6 + $0x20] sm:$0xf]
  %v367 = vld [vmem:[%s6 + $0x24] sm:$0xf]
  %v368 = vld [vmem:[%s6 + $0x28] sm:$0xf]
  %v369 = vld [vmem:[%s6 + $0x2c] sm:$0xf]
  %v370 = vpack.c.bf16 %v365, %v364
  %v371 = vperm.slane %v27, 6
  %v376 = vunpack.c.l.b16 %v366
  %v377 = vunpack.c.l.b16 %v367
  %v378 = vunpack.c.l.b16 %v368
  %v379 = vunpack.c.l.b16 %v369
  %v380 = vpack.c.b16 %v377, %v376
  %v381 = vpack.c.b16 %v379, %v378
  %v385 = vsel %vm31, %v370, 0
  %387 = vmatpush.bf16.msra.mxu0 0
  %388 = vmatpush.bf16.msra.mxu0 0
  %389 = vmatpush.bf16.msra.mxu0 0
  %390 = vmatpush.bf16.msra.mxu0 0
  %391 = vmatpush.bf16.msra.mxu0 0
  %392 = vmatpush.bf16.msra.mxu0 0
  %393 = vmatpush.bf16.msra.mxu0 %v381
  %394 = vmatpush.bf16.msra.mxu0 %v380
  %395 = vmatmul.bf16.gmra.mxu0 %v385
  %v396 = vpop.f32.mrf.mxu0
  %v397 = vadd.f32 %v371, %v396
  %v398 = vpop.f32.mrf.mxu0
  %v399 = vadd.f32 %v371, %v398
  %400 = vdwg.mxu0
  %v401 = vmul.f32 %v397, %v397
  %v402 = vmul.f32 %v399, %v399
  %v403 = vmul.f32 %v397, %v401
  %v404 = vmul.f32 %v399, %v402
  %v405 = vmul.f32 %v403, 0.044715
  %v406 = vmul.f32 %v404, 0.044715
  %v407 = vadd.f32 %v397, %v405
  %v408 = vadd.f32 %v399, %v406
  %v409 = vmul.f32 %v407, 0.7978846
  %v410 = vmul.f32 %v408, 0.7978846
  %v411 = vtanh.pop %v409
  %v412 = vtanh.pop %v410
  %v413 = vadd.f32 %v411, 1.0
  %v414 = vadd.f32 %v412, 1.0
  %v415 = vmul.f32 %v413, 0.5
  %v416 = vmul.f32 %v414, 0.5
  %v417 = vmul.f32 %v397, %v415
  %v418 = vmul.f32 %v399, %v416
  %v419 = vld [vmem:[%s6 + $0x30] sm:$0xf]
  %v420 = vld [vmem:[%s6 + $0x34] sm:$0xf]
  %v421 = vld [vmem:[%s6 + $0x38] sm:$0xf]
  %v422 = vld [vmem:[%s6 + $0x3c] sm:$0xf]
  %v423 = vld [vmem:[%s6 + $0x40] sm:$0xf]
  %v424 = vld [vmem:[%s6 + $0x44] sm:$0xf]
  %v425 = vld [vmem:[%s6 + $0x48] sm:$0xf]
  %v426 = vld [vmem:[%s6 + $0x4c] sm:$0xf]
  %v427 = vpack.c.bf16 %v418, %v417
  %v428 = vperm.slane %v27, 7
  %v437 = vunpack.c.l.b16 %v419
  %v438 = vunpack.c.l.b16 %v420
  %v439 = vunpack.c.l.b16 %v421
  %v440 = vunpack.c.l.b16 %v422
  %v441 = vunpack.c.l.b16 %v423
  %v442 = vunpack.c.l.b16 %v424
  %v443 = vunpack.c.l.b16 %v425
  %v444 = vunpack.c.l.b16 %v426
  %v445 = vpack.c.b16 %v438, %v437
  %v446 = vpack.c.b16 %v440, %v439
  %v447 = vpack.c.b16 %v442, %v441
  %v448 = vpack.c.b16 %v444, %v443
  %vm453 = vcmask 523264
  %v455 = vsel %vm453, %v427, 0
  %457 = vmatpush.bf16.msra.mxu0 0
  %458 = vmatpush.bf16.msra.mxu0 0
  %459 = vmatpush.bf16.msra.mxu0 0
  %460 = vmatpush.bf16.msra.mxu0 0
  %461 = vmatpush.bf16.msra.mxu0 %v448
  %462 = vmatpush.bf16.msra.mxu0 %v447
  %463 = vmatpush.bf16.msra.mxu0 %v446
  %464 = vmatpush.bf16.msra.mxu0 %v445
  %465 = vmatmul.bf16.gmra.mxu0 %v455
  %v466 = vpop.f32.mrf.mxu0
  %v467 = vadd.f32 %v428, %v466
  %v468 = vpop.f32.mrf.mxu0
  %v469 = vadd.f32 %v428, %v468
  %470 = vdwg.mxu0
  %v471 = vadd.f32 %v467, %v364
  %v472 = vadd.f32 %v469, %v365
  %v473 = vsel %vm31, %v471, 0.0
  %474 = vadd.xlane.f32.xlu0 %v473
  %v475 = vpop.xlane.xlu0 %474
  %v476 = vsel %vm31, %v472, 0.0
  %477 = vadd.xlane.f32.xlu0 %v476
  %v478 = vpop.xlane.xlu0 %477
  %v479 = vmul.f32 %v475, %v44
  %v480 = vmul.f32 %v478, %v44
  %v481 = vsub.f32 %v471, %v479
  %v482 = vsub.f32 %v472, %v480
  %v483 = vmul.f32 %v481, %v481
  %v484 = vmul.f32 %v482, %v482
  %v485 = vsel %vm31, %v483, 0.0
  %486 = vadd.xlane.f32.xlu0 %v485
  %v487 = vpop.xlane.xlu0 %486
  %v488 = vsel %vm31, %v484, 0.0
  %489 = vadd.xlane.f32.xlu0 %v488
  %v490 = vpop.xlane.xlu0 %489
  %v491 = vmul.f32 %v487, %v44
  %v492 = vmul.f32 %v490, %v44
  %v493 = vadd.f32 %v491, 1e-12
  %v494 = vadd.f32 %v492, 1e-12
  %v495 = vrsqrt.pop %v493
  %v496 = vmul.f32 %v495, %v493
  %v497 = vmul.f32 %v496, %v495
  %v498 = vmul.f32 0.5, %v497
  %v499 = vsub.f32 1.5, %v498
  %v500 = vmul.f32 %v495, %v499
  %vm501 = vweird.f32 %v493
  %vm502 = vweird.f32 %v495
  %vm503 = vmor %vm501, %vm502
  %v504 = vsel %vm503, %v495, %v500
  %v505 = vrsqrt.pop %v494
  %v506 = vmul.f32 %v505, %v494
  %v507 = vmul.f32 %v506, %v505
  %v508 = vmul.f32 0.5, %v507
  %v509 = vsub.f32 1.5, %v508
  %v510 = vmul.f32 %v505, %v509
  %vm511 = vweird.f32 %v494
  %vm512 = vweird.f32 %v505
  %vm513 = vmor %vm511, %vm512
  %v514 = vsel %vm513, %v505, %v510
  %v515 = vmul.f32 %v481, %v504
  %v516 = vmul.f32 %v482, %v514
  %v517 = vperm.slane %v28, 0
  %v518 = vmul.f32 %v515, %v517
  %v519 = vmul.f32 %v516, %v517
  %v520 = vperm.slane %v28, 1
  %v521 = vadd.f32 %v518, %v520
  %v522 = vadd.f32 %v519, %v520
  %v523 = vld [vmem:[%s2] sm:$0xf]
  %v524 = vld [vmem:[%s2 + $0x4] sm:$0xf]
  %v525 = vld [vmem:[%s2 + $0x8] sm:$0xf]
  %v526 = vld [vmem:[%s2 + $0xc] sm:$0xf]
  %v527 = vld [vmem:[%s2 + $0x10] sm:$0xf]
  %v528 = vld [vmem:[%s2 + $0x14] sm:$0xf]
  %v529 = vld [vmem:[%s2 + $0x18] sm:$0xf]
  %v530 = vld [vmem:[%s2 + $0x1c] sm:$0xf]
  %v531 = vld [vmem:[%s2 + $0x20] sm:$0xf]
  %v532 = vld [vmem:[%s2 + $0x24] sm:$0xf]
  %v533 = vld [vmem:[%s2 + $0x28] sm:$0xf]
  %v534 = vld [vmem:[%s2 + $0x2c] sm:$0xf]
  %v535 = vld [vmem:[%s2 + $0x30] sm:$0xf]
  %v536 = vld [vmem:[%s2 + $0x34] sm:$0xf]
  %v537 = vld [vmem:[%s2 + $0x38] sm:$0xf]
  %v538 = vld [vmem:[%s2 + $0x3c] sm:$0xf]
  %v539 = vld [vmem:[%s2 + $0x40] sm:$0xf]
  %v540 = vld [vmem:[%s2 + $0x44] sm:$0xf]
  %v541 = vld [vmem:[%s2 + $0x48] sm:$0xf]
  %v542 = vld [vmem:[%s2 + $0x4c] sm:$0xf]
  %v543 = vld [vmem:[%s2 + $0x50] sm:$0xf]
  %v544 = vld [vmem:[%s2 + $0x54] sm:$0xf]
  %v545 = vld [vmem:[%s2 + $0x58] sm:$0xf]
  %v546 = vld [vmem:[%s2 + $0x5c] sm:$0xf]
  %v547 = vld [vmem:[%s2 + $0x60] sm:$0xf]
  %v548 = vld [vmem:[%s2 + $0x64] sm:$0xf]
  %v549 = vld [vmem:[%s2 + $0x68] sm:$0xf]
  %v550 = vld [vmem:[%s2 + $0x6c] sm:$0xf]
  %v551 = vld [vmem:[%s2 + $0x70] sm:$0xf]
  %v552 = vld [vmem:[%s2 + $0x74] sm:$0xf]
  %v553 = vld [vmem:[%s2 + $0x78] sm:$0xf]
  %v554 = vld [vmem:[%s2 + $0x7c] sm:$0xf]
  %v555 = vld [vmem:[%s2 + $0x80] sm:$0xf]
  %v556 = vld [vmem:[%s2 + $0x84] sm:$0xf]
  %v557 = vld [vmem:[%s2 + $0x88] sm:$0xf]
  %v558 = vld [vmem:[%s2 + $0x8c] sm:$0xf]
  %v559 = vld [vmem:[%s2 + $0x90] sm:$0xf]
  %v560 = vld [vmem:[%s2 + $0x94] sm:$0xf]
  %v561 = vld [vmem:[%s2 + $0x98] sm:$0xf]
  %v562 = vld [vmem:[%s2 + $0x9c] sm:$0xf]
  %v563 = vld [vmem:[%s6 + $0x50] sm:$0xf]
  %v564 = vld [vmem:[%s6 + $0x54] sm:$0xf]
  %v565 = vld [vmem:[%s6 + $0x58] sm:$0xf]
  %v566 = vld [vmem:[%s6 + $0x5c] sm:$0xf]
  %v567 = vld [vmem:[%s6 + $0x60] sm:$0xf]
  %v568 = vld [vmem:[%s6 + $0x64] sm:$0xf]
  %v569 = vld [vmem:[%s6 + $0x68] sm:$0xf]
  %v570 = vld [vmem:[%s6 + $0x6c] sm:$0xf]
  %v571 = vld [vmem:[%s6 + $0x70] sm:$0xf]
  %v572 = vld [vmem:[%s6 + $0x74] sm:$0xf]
  %v573 = vld [vmem:[%s6 + $0x78] sm:$0xf]
  %v574 = vld [vmem:[%s6 + $0x7c] sm:$0xf]
  %v575 = vld [vmem:[%s6 + $0x80] sm:$0xf]
  %v576 = vld [vmem:[%s6 + $0x84] sm:$0xf]
  %v577 = vld [vmem:[%s6 + $0x88] sm:$0xf]
  %v578 = vld [vmem:[%s6 + $0x8c] sm:$0xf]
  %v579 = vperm.slane %v28, 2
  %v620 = vunpack.c.l.b16 %v523
  %v621 = vunpack.c.l.b16 %v524
  %v622 = vunpack.c.l.b16 %v525
  %v623 = vunpack.c.l.b16 %v526
  %v624 = vunpack.c.l.b16 %v527
  %v625 = vunpack.c.l.b16 %v528
  %v626 = vunpack.c.l.b16 %v529
  %v627 = vunpack.c.l.b16 %v530
  %v628 = vunpack.c.l.b16 %v531
  %v629 = vunpack.c.l.b16 %v532
  %v630 = vunpack.c.l.b16 %v533
  %v631 = vunpack.c.l.b16 %v534
  %v632 = vunpack.c.l.b16 %v535
  %v633 = vunpack.c.l.b16 %v536
  %v634 = vunpack.c.l.b16 %v537
  %v635 = vunpack.c.l.b16 %v538
  %v636 = vunpack.c.l.b16 %v539
  %v637 = vunpack.c.l.b16 %v540
  %v638 = vunpack.c.l.b16 %v541
  %v639 = vunpack.c.l.b16 %v542
  %v640 = vunpack.c.l.b16 %v543
  %v641 = vunpack.c.l.b16 %v544
  %v642 = vunpack.c.l.b16 %v545
  %v643 = vunpack.c.l.b16 %v546
  %v644 = vunpack.c.l.b16 %v547
  %v645 = vunpack.c.l.b16 %v548
  %v646 = vunpack.c.l.b16 %v549
  %v647 = vunpack.c.l.b16 %v550
  %v648 = vunpack.c.l.b16 %v551
  %v649 = vunpack.c.l.b16 %v552
  %v650 = vunpack.c.l.b16 %v553
  %v651 = vunpack.c.l.b16 %v554
  %v652 = vunpack.c.l.b16 %v555
  %v653 = vunpack.c.l.b16 %v556
  %v654 = vunpack.c.l.b16 %v557
  %v655 = vunpack.c.l.b16 %v558
  %v656 = vunpack.c.l.b16 %v559
  %v657 = vunpack.c.l.b16 %v560
  %v658 = vunpack.c.l.b16 %v561
  %v659 = vunpack.c.l.b16 %v562
  %v660 = vpack.c.b16 %v621, %v620
  %v661 = vpack.c.b16 %v623, %v622
  %v662 = vpack.c.b16 %v625, %v624
  %v663 = vpack.c.b16 %v627, %v626
  %v664 = vpack.c.b16 %v629, %v628
  %v665 = vpack.c.b16 %v631, %v630
  %v666 = vpack.c.b16 %v633, %v632
  %v667 = vpack.c.b16 %v635, %v634
  %v668 = vpack.c.b16 %v637, %v636
  %v669 = vpack.c.b16 %v639, %v638
  %v670 = vpack.c.b16 %v641, %v640
  %v671 = vpack.c.b16 %v643, %v642
  %v672 = vpack.c.b16 %v645, %v644
  %v673 = vpack.c.b16 %v647, %v646
  %v674 = vpack.c.b16 %v649, %v648
  %v675 = vpack.c.b16 %v651, %v650
  %v676 = vpack.c.b16 %v653, %v652
  %v677 = vpack.c.b16 %v655, %v654
  %v678 = vpack.c.b16 %v657, %v656
  %v679 = vpack.c.b16 %v659, %v658
  %v716 = vunpack.c.l.b16 %v563
  %v717 = vunpack.c.l.b16 %v564
  %v718 = vunpack.c.l.b16 %v565
  %v719 = vunpack.c.l.b16 %v566
  %v720 = vunpack.c.l.b16 %v567
  %v721 = vunpack.c.l.b16 %v568
  %v722 = vunpack.c.l.b16 %v569
  %v723 = vunpack.c.l.b16 %v570
  %v724 = vunpack.c.l.b16 %v571
  %v725 = vunpack.c.l.b16 %v572
  %v726 = vunpack.c.l.b16 %v573
  %v727 = vunpack.c.l.b16 %v574
  %v728 = vunpack.c.l.b16 %v575
  %v729 = vunpack.c.l.b16 %v576
  %v730 = vunpack.c.l.b16 %v577
  %v731 = vunpack.c.l.b16 %v578
  %v732 = vpack.c.b16 %v717, %v716
  %v733 = vpack.c.b16 %v719, %v718
  %v734 = vpack.c.b16 %v721, %v720
  %v735 = vpack.c.b16 %v723, %v722
  %v736 = vpack.c.b16 %v725, %v724
  %v737 = vpack.c.b16 %v727, %v726
  %v738 = vpack.c.b16 %v729, %v728
  %v739 = vpack.c.b16 %v731, %v730
  %748 = vmatpush.bf16.msra.mxu0 %v739
  %749 = vmatpush.bf16.msra.mxu0 %v738
  %750 = vmatpush.bf16.msra.mxu0 %v737
  %751 = vmatpush.bf16.msra.mxu0 %v736
  %752 = vmatpush.bf16.msra.mxu0 %v735
  %753 = vmatpush.bf16.msra.mxu0 %v734
  %754 = vmatpush.bf16.msra.mxu0 %v733
  %755 = vmatpush.bf16.msra.mxu0 %v732
  %756 = vmatmul.bf16.gmra.mxu0 %v660
  %v757 = vpop.f32.mrf.mxu0
  %v758 = vadd.f32 %v579, %v757
  %v759 = vpop.f32.mrf.mxu0
  %v760 = vadd.f32 %v579, %v759
  %761 = vmatmul.bf16.gmra.mxu0 %v661
  %v762 = vpop.f32.mrf.mxu0
  %v763 = vadd.f32 %v579, %v762
  %v764 = vpop.f32.mrf.mxu0
  %v765 = vadd.f32 %v579, %v764
  %766 = vmatmul.bf16.gmra.mxu0 %v662
  %v767 = vpop.f32.mrf.mxu0
  %v768 = vadd.f32 %v579, %v767
  %v769 = vpop.f32.mrf.mxu0
  %v770 = vadd.f32 %v579, %v769
  %771 = vmatmul.bf16.gmra.mxu0 %v663
  %v772 = vpop.f32.mrf.mxu0
  %v773 = vadd.f32 %v579, %v772
  %v774 = vpop.f32.mrf.mxu0
  %v775 = vadd.f32 %v579, %v774
  %776 = vmatmul.bf16.gmra.mxu0 %v664
  %v777 = vpop.f32.mrf.mxu0
  %v778 = vadd.f32 %v579, %v777
  %v779 = vpop.f32.mrf.mxu0
  %v780 = vadd.f32 %v579, %v779
  %781 = vmatmul.bf16.gmra.mxu0 %v665
  %v782 = vpop.f32.mrf.mxu0
  %v783 = vadd.f32 %v579, %v782
  %v784 = vpop.f32.mrf.mxu0
  %v785 = vadd.f32 %v579, %v784
  %786 = vmatmul.bf16.gmra.mxu0 %v666
  %v787 = vpop.f32.mrf.mxu0
  %v788 = vadd.f32 %v579, %v787
  %v789 = vpop.f32.mrf.mxu0
  %v790 = vadd.f32 %v579, %v789
  %791 = vmatmul.bf16.gmra.mxu0 %v667
  %v792 = vpop.f32.mrf.mxu0
  %v793 = vadd.f32 %v579, %v792
  %v794 = vpop.f32.mrf.mxu0
  %v795 = vadd.f32 %v579, %v794
  %796 = vmatmul.bf16.gmra.mxu0 %v668
  %v797 = vpop.f32.mrf.mxu0
  %v798 = vadd.f32 %v579, %v797
  %v799 = vpop.f32.mrf.mxu0
  %v800 = vadd.f32 %v579, %v799
  %801 = vmatmul.bf16.gmra.mxu0 %v669
  %v802 = vpop.f32.mrf.mxu0
  %v803 = vadd.f32 %v579, %v802
  %v804 = vpop.f32.mrf.mxu0
  %v805 = vadd.f32 %v579, %v804
  %806 = vmatmul.bf16.gmra.mxu0 %v670
  %v807 = vpop.f32.mrf.mxu0
  %v808 = vadd.f32 %v579, %v807
  %v809 = vpop.f32.mrf.mxu0
  %v810 = vadd.f32 %v579, %v809
  %811 = vmatmul.bf16.gmra.mxu0 %v671
  %v812 = vpop.f32.mrf.mxu0
  %v813 = vadd.f32 %v579, %v812
  %v814 = vpop.f32.mrf.mxu0
  %v815 = vadd.f32 %v579, %v814
  %816 = vmatmul.bf16.gmra.mxu0 %v672
  %v817 = vpop.f32.mrf.mxu0
  %v818 = vadd.f32 %v579, %v817
  %v819 = vpop.f32.mrf.mxu0
  %v820 = vadd.f32 %v579, %v819
  %821 = vmatmul.bf16.gmra.mxu0 %v673
  %v822 = vpop.f32.mrf.mxu0
  %v823 = vadd.f32 %v579, %v822
  %v824 = vpop.f32.mrf.mxu0
  %v825 = vadd.f32 %v579, %v824
  %826 = vmatmul.bf16.gmra.mxu0 %v674
  %v827 = vpop.f32.mrf.mxu0
  %v828 = vadd.f32 %v579, %v827
  %v829 = vpop.f32.mrf.mxu0
  %v830 = vadd.f32 %v579, %v829
  %831 = vmatmul.bf16.gmra.mxu0 %v675
  %v832 = vpop.f32.mrf.mxu0
  %v833 = vadd.f32 %v579, %v832
  %v834 = vpop.f32.mrf.mxu0
  %v835 = vadd.f32 %v579, %v834
  %836 = vmatmul.bf16.gmra.mxu0 %v676
  %v837 = vpop.f32.mrf.mxu0
  %v838 = vadd.f32 %v579, %v837
  %v839 = vpop.f32.mrf.mxu0
  %v840 = vadd.f32 %v579, %v839
  %841 = vmatmul.bf16.gmra.mxu0 %v677
  %v842 = vpop.f32.mrf.mxu0
  %v843 = vadd.f32 %v579, %v842
  %v844 = vpop.f32.mrf.mxu0
  %v845 = vadd.f32 %v579, %v844
  %846 = vmatmul.bf16.gmra.mxu0 %v678
  %v847 = vpop.f32.mrf.mxu0
  %v848 = vadd.f32 %v579, %v847
  %v849 = vpop.f32.mrf.mxu0
  %v850 = vadd.f32 %v579, %v849
  %851 = vmatmul.bf16.gmra.mxu0 %v679
  %v852 = vpop.f32.mrf.mxu0
  %v853 = vadd.f32 %v579, %v852
  %v854 = vpop.f32.mrf.mxu0
  %v855 = vadd.f32 %v579, %v854
  %856 = vdwg.mxu0
  %v857 = vmax.f32 %v758, 0.0
  %v858 = vmax.f32 %v760, 0.0
  %v859 = vmax.f32 %v763, 0.0
  %v860 = vmax.f32 %v765, 0.0
  %v861 = vmax.f32 %v768, 0.0
  %v862 = vmax.f32 %v770, 0.0
  %v863 = vmax.f32 %v773, 0.0
  %v864 = vmax.f32 %v775, 0.0
  %v865 = vmax.f32 %v778, 0.0
  %v866 = vmax.f32 %v780, 0.0
  %v867 = vmax.f32 %v783, 0.0
  %v868 = vmax.f32 %v785, 0.0
  %v869 = vmax.f32 %v788, 0.0
  %v870 = vmax.f32 %v790, 0.0
  %v871 = vmax.f32 %v793, 0.0
  %v872 = vmax.f32 %v795, 0.0
  %v873 = vmax.f32 %v798, 0.0
  %v874 = vmax.f32 %v800, 0.0
  %v875 = vmax.f32 %v803, 0.0
  %v876 = vmax.f32 %v805, 0.0
  %v877 = vmax.f32 %v808, 0.0
  %v878 = vmax.f32 %v810, 0.0
  %v879 = vmax.f32 %v813, 0.0
  %v880 = vmax.f32 %v815, 0.0
  %v881 = vmax.f32 %v818, 0.0
  %v882 = vmax.f32 %v820, 0.0
  %v883 = vmax.f32 %v823, 0.0
  %v884 = vmax.f32 %v825, 0.0
  %v885 = vmax.f32 %v828, 0.0
  %v886 = vmax.f32 %v830, 0.0
  %v887 = vmax.f32 %v833, 0.0
  %v888 = vmax.f32 %v835, 0.0
  %v889 = vmax.f32 %v838, 0.0
  %v890 = vmax.f32 %v840, 0.0
  %v891 = vmax.f32 %v843, 0.0
  %v892 = vmax.f32 %v845, 0.0
  %v893 = vmax.f32 %v848, 0.0
  %v894 = vmax.f32 %v850, 0.0
  %v895 = vmax.f32 %v853, 0.0
  %v896 = vmax.f32 %v855, 0.0
  %v897 = vsel %vm453, %v857, -inf
  %v898 = vsel %vm453, %v859, -inf
  %v899 = vsel %vm453, %v861, -inf
  %v900 = vmax.f32 %v897, %v899
  %v901 = vsel %vm453, %v863, -inf
  %v902 = vmax.f32 %v898, %v901
  %v903 = vsel %vm453, %v865, -inf
  %v904 = vmax.f32 %v900, %v903
  %v905 = vsel %vm453, %v867, -inf
  %v906 = vmax.f32 %v902, %v905
  %v907 = vsel %vm453, %v869, -inf
  %v908 = vmax.f32 %v904, %v907
  %v909 = vsel %vm453, %v871, -inf
  %v910 = vmax.f32 %v906, %v909
  %v911 = vsel %vm453, %v873, -inf
  %v912 = vmax.f32 %v908, %v911
  %v913 = vsel %vm453, %v875, -inf
  %v914 = vmax.f32 %v910, %v913
  %v915 = vsel %vm453, %v877, -inf
  %v916 = vmax.f32 %v912, %v915
  %v917 = vsel %vm453, %v879, -inf
  %v918 = vmax.f32 %v914, %v917
  %v919 = vsel %vm453, %v881, -inf
  %v920 = vmax.f32 %v916, %v919
  %v921 = vsel %vm453, %v883, -inf
  %v922 = vmax.f32 %v918, %v921
  %v923 = vsel %vm453, %v885, -inf
  %v924 = vmax.f32 %v920, %v923
  %v925 = vsel %vm453, %v887, -inf
  %v926 = vmax.f32 %v922, %v925
  %v927 = vsel %vm453, %v889, -inf
  %v928 = vmax.f32 %v924, %v927
  %v929 = vsel %vm453, %v891, -inf
  %v930 = vmax.f32 %v926, %v929
  %v931 = vsel %vm453, %v893, -inf
  %v932 = vmax.f32 %v928, %v931
  %v933 = vsel %vm453, %v895, -inf
  %v934 = vmax.f32 %v930, %v933
  %v935 = vmax.f32 %v932, %v934
  %v936 = vsel %vm453, %v858, -inf
  %v937 = vsel %vm453, %v860, -inf
  %v938 = vsel %vm453, %v862, -inf
  %v939 = vmax.f32 %v936, %v938
  %v940 = vsel %vm453, %v864, -inf
  %v941 = vmax.f32 %v937, %v940
  %v942 = vsel %vm453, %v866, -inf
  %v943 = vmax.f32 %v939, %v942
  %v944 = vsel %vm453, %v868, -inf
  %v945 = vmax.f32 %v941, %v944
  %v946 = vsel %vm453, %v870, -inf
  %v947 = vmax.f32 %v943, %v946
  %v948 = vsel %vm453, %v872, -inf
  %v949 = vmax.f32 %v945, %v948
  %v950 = vsel %vm453, %v874, -inf
  %v951 = vmax.f32 %v947, %v950
  %v952 = vsel %vm453, %v876, -inf
  %v953 = vmax.f32 %v949, %v952
  %v954 = vsel %vm453, %v878, -inf
  %v955 = vmax.f32 %v951, %v954
  %v956 = vsel %vm453, %v880, -inf
  %v957 = vmax.f32 %v953, %v956
  %v958 = vsel %vm453, %v882, -inf
  %v959 = vmax.f32 %v955, %v958
  %v960 = vsel %vm453, %v884, -inf
  %v961 = vmax.f32 %v957, %v960
  %v962 = vsel %vm453, %v886, -inf
  %v963 = vmax.f32 %v959, %v962
  %v964 = vsel %vm453, %v888, -inf
  %v965 = vmax.f32 %v961, %v964
  %v966 = vsel %vm453, %v890, -inf
  %v967 = vmax.f32 %v963, %v966
  %v968 = vsel %vm453, %v892, -inf
  %v969 = vmax.f32 %v965, %v968
  %v970 = vsel %vm453, %v894, -inf
  %v971 = vmax.f32 %v967, %v970
  %v972 = vsel %vm453, %v896, -inf
  %v973 = vmax.f32 %v969, %v972
  %v974 = vmax.f32 %v971, %v973
  %v975 = vld [vmem:[%s3] sm:$0x3]
  %v976 = vld [vmem:[%s6 + $0x90] sm:$0xf]
  %v977 = vld [vmem:[%s6 + $0x94] sm:$0xf]
  %v978 = vpack.c.bf16 %v975, %v975
  %v979 = vperm.slane %v28, 3
  %v982 = vunpack.c.l.b16 %v976
  %v983 = vunpack.c.l.b16 %v977
  %v984 = vpack.c.b16 %v983, %v982
  %v987 = vsel %vm130, %v978, 0
  %989 = vmatpush.bf16.msra.mxu0 0
  %990 = vmatpush.bf16.msra.mxu0 0
  %991 = vmatpush.bf16.msra.mxu0 0
  %992 = vmatpush.bf16.msra.mxu0 0
  %993 = vmatpush.bf16.msra.mxu0 0
  %994 = vmatpush.bf16.msra.mxu0 0
  %995 = vmatpush.bf16.msra.mxu0 0
  %996 = vmatpush.bf16.msra.mxu0 %v984
  %997 = vmatmul.bf16.gmra.mxu0 %v987
  %v998 = vpop.f32.mrf.mxu0
  %v999 = vadd.f32 %v979, %v998
  %v1000 = vpop.f32.mrf.mxu0
  %1001 = vdwg.mxu0
  %v1002 = vld [vmem:[%s6 + $0x98] sm:$0xf]
  %v1003 = vld [vmem:[%s6 + $0x9c] sm:$0xf]
  %v1004 = vld [vmem:[%s6 + $0xa0] sm:$0xf]
  %v1005 = vld [vmem:[%s6 + $0xa4] sm:$0xf]
  %v1006 = vpack.c.bf16 %v522, %v521
  %v1007 = vld [vmem:[%s6 + $0xa8] sm:$0xf]
  %v1008 = vld [vmem:[%s6 + $0xac] sm:$0xf]
  %v1009 = vld [vmem:[%s6 + $0xb0] sm:$0xf]
  %v1010 = vld [vmem:[%s6 + $0xb4] sm:$0xf]
  %v1011 = vld [vmem:[%s6 + $0xb8] sm:$0xf]
  %v1012 = vld [vmem:[%s6 + $0xbc] sm:$0xf]
  %v1013 = vld [vmem:[%s6 + $0xc0] sm:$0xf]
  %v1014 = vld [vmem:[%s6 + $0xc4] sm:$0xf]
  %v1015 = vpack.c.bf16 %v974, %v935
  %v1024 = vunpack.c.l.b16 %v1007
  %v1025 = vunpack.c.l.b16 %v1008
  %v1026 = vunpack.c.l.b16 %v1009
  %v1027 = vunpack.c.l.b16 %v1010
  %v1028 = vunpack.c.l.b16 %v1011
  %v1029 = vunpack.c.l.b16 %v1012
  %v1030 = vunpack.c.l.b16 %v1013
  %v1031 = vunpack.c.l.b16 %v1014
  %v1032 = vpack.c.b16 %v1025, %v1024
  %v1033 = vpack.c.b16 %v1027, %v1026
  %v1034 = vpack.c.b16 %v1029, %v1028
  %v1035 = vpack.c.b16 %v1031, %v1030
  %v1041 = vsel %vm453, %v1015, 0
  %1043 = vmatpush.bf16.msra.mxu0 0
  %1044 = vmatpush.bf16.msra.mxu0 0
  %1045 = vmatpush.bf16.msra.mxu0 0
  %1046 = vmatpush.bf16.msra.mxu0 0
  %1047 = vmatpush.bf16.msra.mxu0 %v1035
  %1048 = vmatpush.bf16.msra.mxu0 %v1034
  %1049 = vmatpush.bf16.msra.mxu0 %v1033
  %1050 = vmatpush.bf16.msra.mxu0 %v1032
  %1051 = vmatmul.bf16.gmra.mxu0 %v1041
  %v1052 = vpop.f32.mrf.mxu0
  %v1053 = vadd.f32 0.0, %v1052
  %v1054 = vpop.f32.mrf.mxu0
  %v1055 = vadd.f32 0.0, %v1054
  %1056 = vdwg.mxu0
  %v1061 = vunpack.c.l.b16 %v1002
  %v1062 = vunpack.c.l.b16 %v1003
  %v1063 = vunpack.c.l.b16 %v1004
  %v1064 = vunpack.c.l.b16 %v1005
  %v1065 = vpack.c.b16 %v1062, %v1061
  %v1066 = vpack.c.b16 %v1064, %v1063
  %v1070 = vsel %vm31, %v1006, 0
  %1072 = vmatpush.bf16.msra.mxu0 0
  %1073 = vmatpush.bf16.msra.mxu0 0
  %1074 = vmatpush.bf16.msra.mxu0 0
  %1075 = vmatpush.bf16.msra.mxu0 0
  %1076 = vmatpush.bf16.msra.mxu0 0
  %1077 = vmatpush.bf16.msra.mxu0 0
  %1078 = vmatpush.bf16.msra.mxu0 %v1066
  %1079 = vmatpush.bf16.msra.mxu0 %v1065
  %1080 = vmatmul.bf16.gmra.mxu0 %v1070
  %v1081 = vpop.f32.mrf.mxu0
  %v1082 = vadd.f32 %v1053, %v1081
  %v1083 = vpop.f32.mrf.mxu0
  %v1084 = vadd.f32 %v1055, %v1083
  %1085 = vdwg.mxu0
  %v1086 = vperm.slane %v28, 4
  %v1087 = vadd.f32 %v1082, %v1086
  %v1088 = vadd.f32 %v1084, %v1086
  %v1089 = vld [vmem:[%s6 + $0xc8] sm:$0xf]
  %v1090 = vld [vmem:[%s6 + $0xcc] sm:$0xf]
  %v1091 = vld [vmem:[%s6 + $0xd0] sm:$0xf]
  %v1092 = vld [vmem:[%s6 + $0xd4] sm:$0xf]
  %v1093 = vld [vmem:[%s6 + $0xd8] sm:$0xf]
  %v1094 = vld [vmem:[%s6 + $0xdc] sm:$0xf]
  %v1095 = vld [vmem:[%s6 + $0xe0] sm:$0xf]
  %v1096 = vld [vmem:[%s6 + $0xe4] sm:$0xf]
  %v1097 = vpack.c.bf16 %v999, %v999
  %v1098 = vld [vmem:[%s4] sm:$0x3]
  %v1099 = vld [vmem:[%s6 + $0xe8] sm:$0xf]
  %v1100 = vld [vmem:[%s6 + $0xec] sm:$0xf]
  %v1101 = vld [vmem:[%s6 + $0xf0] sm:$0xf]
  %v1102 = vld [vmem:[%s6 + $0xf4] sm:$0xf]
  %v1103 = vld [vmem:[%s6 + $0xf8] sm:$0xf]
  %v1104 = vld [vmem:[%s6 + $0xfc] sm:$0xf]
  %v1105 = vld [vmem:[%s6 + $0x100] sm:$0xf]
  %v1106 = vld [vmem:[%s6 + $0x104] sm:$0xf]
  %v1107 = vld [vmem:[%s6 + $0x108] sm:$0xf]
  %v1108 = vld [vmem:[%s6 + $0x10c] sm:$0xf]
  %v1109 = vld [vmem:[%s6 + $0x110] sm:$0xf]
  %v1110 = vld [vmem:[%s6 + $0x114] sm:$0xf]
  %v1111 = vld [vmem:[%s6 + $0x118] sm:$0xf]
  %v1112 = vld [vmem:[%s6 + $0x11c] sm:$0xf]
  %v1113 = vld [vmem:[%s6 + $0x120] sm:$0xf]
  %v1114 = vld [vmem:[%s6 + $0x124] sm:$0xf]
  %v1115 = vpack.c.bf16 %v1098, %v1098
  %v1132 = vunpack.c.l.b16 %v1099
  %v1133 = vunpack.c.l.b16 %v1100
  %v1134 = vunpack.c.l.b16 %v1101
  %v1135 = vunpack.c.l.b16 %v1102
  %v1136 = vunpack.c.l.b16 %v1103
  %v1137 = vunpack.c.l.b16 %v1104
  %v1138 = vunpack.c.l.b16 %v1105
  %v1139 = vunpack.c.l.b16 %v1106
  %v1140 = vunpack.c.l.b16 %v1107
  %v1141 = vunpack.c.l.b16 %v1108
  %v1142 = vunpack.c.l.b16 %v1109
  %v1143 = vunpack.c.l.b16 %v1110
  %v1144 = vunpack.c.l.b16 %v1111
  %v1145 = vunpack.c.l.b16 %v1112
  %v1146 = vunpack.c.l.b16 %v1113
  %v1147 = vunpack.c.l.b16 %v1114
  %v1148 = vpack.c.b16 %v1133, %v1132
  %v1149 = vpack.c.b16 %v1135, %v1134
  %v1150 = vpack.c.b16 %v1137, %v1136
  %v1151 = vpack.c.b16 %v1139, %v1138
  %v1152 = vpack.c.b16 %v1141, %v1140
  %v1153 = vpack.c.b16 %v1143, %v1142
  %v1154 = vpack.c.b16 %v1145, %v1144
  %v1155 = vpack.c.b16 %v1147, %v1146
  %1164 = vmatpush.bf16.msra.mxu0 %v1155
  %1165 = vmatpush.bf16.msra.mxu0 %v1154
  %1166 = vmatpush.bf16.msra.mxu0 %v1153
  %1167 = vmatpush.bf16.msra.mxu0 %v1152
  %1168 = vmatpush.bf16.msra.mxu0 %v1151
  %1169 = vmatpush.bf16.msra.mxu0 %v1150
  %1170 = vmatpush.bf16.msra.mxu0 %v1149
  %1171 = vmatpush.bf16.msra.mxu0 %v1148
  %1172 = vmatmul.bf16.gmra.mxu0 %v1115
  %v1173 = vpop.f32.mrf.mxu0
  %v1174 = vadd.f32 0.0, %v1173
  %v1175 = vpop.f32.mrf.mxu0
  %1176 = vdwg.mxu0
  %v1185 = vunpack.c.l.b16 %v1089
  %v1186 = vunpack.c.l.b16 %v1090
  %v1187 = vunpack.c.l.b16 %v1091
  %v1188 = vunpack.c.l.b16 %v1092
  %v1189 = vunpack.c.l.b16 %v1093
  %v1190 = vunpack.c.l.b16 %v1094
  %v1191 = vunpack.c.l.b16 %v1095
  %v1192 = vunpack.c.l.b16 %v1096
  %v1193 = vpack.c.b16 %v1186, %v1185
  %v1194 = vpack.c.b16 %v1188, %v1187
  %v1195 = vpack.c.b16 %v1190, %v1189
  %v1196 = vpack.c.b16 %v1192, %v1191
  %v1202 = vsel %vm453, %v1097, 0
  %1204 = vmatpush.bf16.msra.mxu0 0
  %1205 = vmatpush.bf16.msra.mxu0 0
  %1206 = vmatpush.bf16.msra.mxu0 0
  %1207 = vmatpush.bf16.msra.mxu0 0
  %1208 = vmatpush.bf16.msra.mxu0 %v1196
  %1209 = vmatpush.bf16.msra.mxu0 %v1195
  %1210 = vmatpush.bf16.msra.mxu0 %v1194
  %1211 = vmatpush.bf16.msra.mxu0 %v1193
  %1212 = vmatmul.bf16.gmra.mxu0 %v1202
  %v1213 = vpop.f32.mrf.mxu0
  %v1214 = vadd.f32 %v1174, %v1213
  %v1215 = vpop.f32.mrf.mxu0
  %1216 = vdwg.mxu0
  %v1218 = vrot.slane %v1214, 1
  %v1219 = vperm.slane %v1214, 0
  %v1220 = vperm.slane %v1218, 0
  %v1223 = vadd.f32 %v1087, %v1219
  %v1224 = vadd.f32 %v1088, %v1220
  %1225 = vst [vmem:[%s7] sm:$0xff] %v1223
  %1226 = vst [vmem:[%s7 + $0x8] sm:$0xff] %v1224
  // Predicated region
  $region30: #{forward.1} parent=0 // pred_check
    _
  $region31: #{forward.1} parent=0 // pred_check_branch
    %1228 = sbr.rel (0) target = $region33
  $region32: #{forward.1} parent=0 // pred_region
    _
  $region33: #{forward.1} parent=0 // pred_fallthru
    _
  // Predicated region
  $region34: #{forward.1} parent=0 // pred_check
    _
  $region35: #{forward.1} parent=0 // pred_check_branch
    %1230 = sbr.rel (0) target = $region37
  $region36: #{forward.1} parent=0 // pred_region
    _
  $region37: #{forward.1} parent=0 // pred_fallthru
    _

</llo_original>
